<compile_context>
chip_gen: v7x
topology: tpu7x:2x2x1
jax: 0.10.0
libtpu: 0.0.40
codegen_flags: <defaults>
</compile_context>

<pallas_src>
import numpy as np
import jax
import jax.numpy as jnp
from jax.experimental import pallas as pl
from jax.experimental.pallas import tpu as pltpu

NEG_SLOPE = 0.01   # nn.LeakyReLU default
BN_EPS = 1e-5      # nn.BatchNorm2d default


# ------------------------------ kernel helpers ------------------------------

def _leaky_relu(y):
    return jnp.where(y > 0, y, NEG_SLOPE * y)


def _conv3x3_banded(pad_ref, k_lanes, wband, bias_row, n, h):
    """3x3 / stride-1 conv as 3 banded matmuls (one per kernel row dy).

    pad_ref : (N, H+2, WLpad) VMEM scratch, height-padded, lane-dense (w,c)
    k_lanes : number of input lanes actually used (W * Cin)
    wband   : (3, k_lanes, W*Cout) banded weights (width padding folded in)
    bias_row: (1, W*Cout) bias tiled across width
    returns : (N*H, W*Cout) f32
    """
    nout = wband.shape[2]
    acc = jnp.zeros((n * h, nout), jnp.float32)
    for dy in range(3):
        a = pad_ref[:, dy:dy + h, :k_lanes].reshape(n * h, k_lanes)
        acc = acc + jnp.dot(a, wband[dy], preferred_element_type=jnp.float32)
    return acc + bias_row


def _batchnorm_train(y, gamma_l, beta_l, cmap, cmap_t, nhw):
    """Training-mode BN on lane-dense y (N*H, W*C): per-channel batch stats
    (biased variance), folded into a single per-lane scale/shift."""
    rsum = jnp.sum(y, axis=0, keepdims=True)                                  # (1, W*C)
    mean_c = jnp.dot(rsum, cmap, preferred_element_type=jnp.float32) / nhw    # (1, C)
    mean_l = jnp.dot(mean_c, cmap_t, preferred_element_type=jnp.float32)      # (1, W*C)
    d = y - mean_l
    rss = jnp.sum(d * d, axis=0, keepdims=True)                               # (1, W*C)
    var_c = jnp.dot(rss, cmap, preferred_element_type=jnp.float32) / nhw      # (1, C)
    var_l = jnp.dot(var_c, cmap_t, preferred_element_type=jnp.float32)        # (1, W*C)
    scale_l = gamma_l * jax.lax.rsqrt(var_l + BN_EPS)
    shift_l = beta_l - mean_l * scale_l
    return y * scale_l + shift_l


# -------------------------------- the kernel ---------------------------------

def bottleneck_kernel(x_ref, wb1_ref, wb2_ref, wb3_ref, b_ref, bn_ref,
                      cmap_ref, cmapT_ref, out_ref, pad_ref):
    n, hp2, wl_pad = pad_ref.shape
    h = hp2 - 2
    k1 = x_ref.shape[2]            # W * Cin
    wlm = wb2_ref.shape[1]         # W * Cmid
    wlo = out_ref.shape[1]         # W * Cout
    cmid = cmap_ref.shape[1]
    w = wlm // cmid
    nhw = n * h * w

    # Zero only the two border rows of the height-padded scratch; interiors
    # are always fully overwritten before being read.
    zrow = jnp.zeros((n, 1, wl_pad), jnp.float32)
    pad_ref[:, 0:1, :] = zrow
    pad_ref[:, hp2 - 1:hp2, :] = zrow

    # ---- Conv1 -> LeakyReLU -> BatchNorm (training-mode batch stats) ----
    pad_ref[:, 1:h + 1, :k1] = x_ref[...]
    y = _conv3x3_banded(pad_ref, k1, wb1_ref[...], b_ref[0:1, :wlm], n, h)
    y = _leaky_relu(y)
    y = _batchnorm_train(y, bn_ref[0:1, :], bn_ref[1:2, :],
                         cmap_ref[...], cmapT_ref[...], nhw)

    # ---- Conv2 -> LeakyReLU ----
    pad_ref[:, 1:h + 1, :wlm] = y.reshape(n, h, wlm)
    y = _conv3x3_banded(pad_ref, wlm, wb2_ref[...], b_ref[1:2, :wlm], n, h)
    y = _leaky_relu(y)

    # ---- Conv3 -> LeakyReLU ----
    pad_ref[:, 1:h + 1, :wlm] = y.reshape(n, h, wlm)
    y = _conv3x3_banded(pad_ref, wlm, wb3_ref[...], b_ref[2:3, :wlo], n, h)
    y = _leaky_relu(y)

    out_ref[...] = y               # lane-dense (N*H, W*Cout) store


# ------------------------------ host wrapper ---------------------------------

def _pack_banded(w_hwio, width):
    """(3,3,Cin,Cout) HWIO conv weight -> (3, W*Cin, W*Cout) banded matrices.
    Width zero-padding is folded in (out-of-range taps are omitted)."""
    kh, kw, cin, cout = w_hwio.shape
    assert kh == 3 and kw == 3
    wnp = np.asarray(w_hwio, np.float32)
    wb = np.zeros((3, width * cin, width * cout), np.float32)
    for dy in range(3):
        for dx in range(3):
            for wc in range(width):
                iw = wc + dx - 1
                if 0 <= iw < width:
                    wb[dy, iw * cin:(iw + 1) * cin,
                       wc * cout:(wc + 1) * cout] = wnp[dy, dx]
    return jnp.asarray(wb)


def bottleneck_block(x_nhwc, params):
    """x_nhwc: (N, H, W, Cin) f32, NHWC. Returns (N, H, W, Cout) f32, NHWC."""
    n, h, w, cin = x_nhwc.shape
    cmid = params["w1"].shape[3]
    cout = params["w3"].shape[3]
    wlm, wlo = w * cmid, w * cout
    wl_pad = w * max(cin, cmid)        # scratch lane width
    wl_b = max(wlm, wlo)               # packed-bias lane width

    wb1 = _pack_banded(params["w1"], w)      # (3, W*Cin,  W*Cmid)
    wb2 = _pack_banded(params["w2"], w)      # (3, W*Cmid, W*Cmid)
    wb3 = _pack_banded(params["w3"], w)      # (3, W*Cmid, W*Cout)

    bvec = np.zeros((3, wl_b), np.float32)   # biases tiled across width
    bvec[0, :wlm] = np.tile(np.asarray(params["b1"], np.float32).reshape(-1), w)
    bvec[1, :wlm] = np.tile(np.asarray(params["b2"], np.float32).reshape(-1), w)
    bvec[2, :wlo] = np.tile(np.asarray(params["b3"], np.float32).reshape(-1), w)
    bvec = jnp.asarray(bvec)

    bn_l = jnp.asarray(np.stack([            # gamma / beta tiled across width
        np.tile(np.asarray(params["g1"], np.float32).reshape(-1), w),
        np.tile(np.asarray(params["be1"], np.float32).reshape(-1), w)]))

    eye = np.eye(cmid, dtype=np.float32)
    cmap = jnp.asarray(np.tile(eye, (w, 1)))    # (W*Cmid, Cmid): lane -> channel reduce
    cmap_t = jnp.asarray(np.tile(eye, (1, w)))  # (Cmid, W*Cmid): channel -> lane expand

    x2 = x_nhwc.reshape(n, h, w * cin)          # free: contiguous NHWC flatten

    inputs = (x2, wb1, wb2, wb3, bvec, bn_l, cmap, cmap_t)

    out2d = pl.pallas_call(
        bottleneck_kernel,
        out_shape=jax.ShapeDtypeStruct((n * h, wlo), jnp.float32),
        in_specs=[pl.BlockSpec(memory_space=pltpu.MemorySpace.VMEM)] * len(inputs),
        out_specs=pl.BlockSpec(memory_space=pltpu.MemorySpace.VMEM),
        scratch_shapes=[pltpu.VMEM((n, h + 2, wl_pad), jnp.float32)],
    )(*inputs)
    # (N*H, W*Cout) -> (N, H, W, Cout) is a pure metadata reshape (row-major).
    return out2d.reshape(n, h, w, cout)


# ----------------------------- pure-JAX reference ----------------------------

def _conv_ref(x, w, b):
    y = jax.lax.conv_general_dilated(
        x, w, window_strides=(1, 1), padding="SAME",
        dimension_numbers=("NHWC", "HWIO", "NHWC"))
    return y + b.reshape(1, 1, 1, -1)


def _bn_ref(y, gamma, beta):
    mean = jnp.mean(y, axis=(0, 1, 2), keepdims=True)
    var = jnp.mean((y - mean) ** 2, axis=(0, 1, 2), keepdims=True)
    return (y - mean) * jax.lax.rsqrt(var + BN_EPS) * gamma.reshape(1, 1, 1, -1) \
        + beta.reshape(1, 1, 1, -1)


def bottleneck_block_ref(x, p):
    y = _conv_ref(x, p["w1"], p["b1"])
    y = jnp.where(y > 0, y, NEG_SLOPE * y)
    y = _bn_ref(y, p["g1"], p["be1"])
    y = _conv_ref(y, p["w2"], p["b2"])
    y = jnp.where(y > 0, y, NEG_SLOPE * y)
    y = _conv_ref(y, p["w3"], p["b3"])
    y = jnp.where(y > 0, y, NEG_SLOPE * y)
    return y


# ---------------------------------- main --------------------------------------

def _init_params(key, cin, cmid, cout):
    ks = jax.random.split(key, 8)

    def conv_w(k, ci, co):
        return jax.random.normal(k, (3, 3, ci, co), jnp.float32) * 0.1

    def vec(k, co, scale=0.05):
        return jax.random.normal(k, (co,), jnp.float32) * scale

    return {
        # Conv1 + BatchNorm params
        "w1": conv_w(ks[0], cin, cmid), "b1": vec(ks[1], cmid),
        "g1": 1.0 + 0.1 * jax.random.normal(ks[2], (cmid,), jnp.float32),
        "be1": 0.1 * jax.random.normal(ks[3], (cmid,), jnp.float32),
        # Conv2
        "w2": conv_w(ks[4], cmid, cmid), "b2": vec(ks[5], cmid),
        # Conv3
        "w3": conv_w(ks[6], cmid, cout), "b3": vec(ks[7], cout),
    }


if __name__ == "__main__":
    # TODO(synk): BatchNorm2d running_mean/running_var updates are a
    # training-time side effect of the PyTorch module; they do not affect the
    # forward output and are not modeled here.
    key = jax.random.PRNGKey(0)
    k_x, k_p = jax.random.split(key)

    # BottleneckBlock(in_channels=4, intermediate_channels=16, out_channels=16)
    N, H, W, Cin, Cmid, Cout = 2, 16, 16, 4, 16, 16
    x = jax.random.normal(k_x, (N, H, W, Cin), jnp.float32)   # NHWC
    params = _init_params(k_p, Cin, Cmid, Cout)

    out = jax.block_until_ready(bottleneck_block(x, params))
    ref = jax.block_until_ready(bottleneck_block_ref(x, params))

    np.testing.assert_allclose(np.asarray(out), np.asarray(ref),
                               rtol=1e-4, atol=1e-4)
    print("KERNEL_OK")
</pallas_src>

<mosaic_0001>
module attributes {stable_mosaic.version = 11 : i64} {
  func.func @bottleneck_kernel(%arg0: memref<2x16x64xf32, #tpu.memory_space<vmem>>, %arg1: memref<3x64x256xf32, #tpu.memory_space<vmem>>, %arg2: memref<3x256x256xf32, #tpu.memory_space<vmem>>, %arg3: memref<3x256x256xf32, #tpu.memory_space<vmem>>, %arg4: memref<3x256xf32, #tpu.memory_space<vmem>>, %arg5: memref<2x256xf32, #tpu.memory_space<vmem>>, %arg6: memref<256x16xf32, #tpu.memory_space<vmem>>, %arg7: memref<16x256xf32, #tpu.memory_space<vmem>>, %arg8: memref<32x256xf32, #tpu.memory_space<vmem>>, %arg9: memref<2x18x256xf32, #tpu.memory_space<vmem>>) attributes {dimension_semantics = [], scalar_prefetch = 0 : i64, scratch_operands = 1 : i64, tpu.core_type = #tpu.core_type<tc>} {
    %cst = arith.constant 0.000000e+00 : f32
    %0 = vector.broadcast %cst : f32 to vector<2x1x256xf32>
    %c0 = arith.constant 0 : index
    %c0_0 = arith.constant 0 : index
    %c0_1 = arith.constant 0 : index
    %1 = vector.load %arg9[%c0, %c0_0, %c0_1] : memref<2x18x256xf32, #tpu.memory_space<vmem>>, vector<2x1x256xf32>
    tpu.vector_store %arg9[%c0, %c0_0, %c0_1], %0 {strides = array<i32>} : memref<2x18x256xf32, #tpu.memory_space<vmem>>, vector<2x1x256xf32>,
    %c0_2 = arith.constant 0 : index
    %c17 = arith.constant 17 : index
    %c0_3 = arith.constant 0 : index
    %2 = vector.load %arg9[%c0_2, %c17, %c0_3] : memref<2x18x256xf32, #tpu.memory_space<vmem>>, vector<2x1x256xf32>
    tpu.vector_store %arg9[%c0_2, %c17, %c0_3], %0 {strides = array<i32>} : memref<2x18x256xf32, #tpu.memory_space<vmem>>, vector<2x1x256xf32>,
    %c0_4 = arith.constant 0 : index
    %c0_5 = arith.constant 0 : index
    %c0_6 = arith.constant 0 : index
    %3 = vector.load %arg0[%c0_4, %c0_5, %c0_6] : memref<2x16x64xf32, #tpu.memory_space<vmem>>, vector<2x16x64xf32>
    %c0_7 = arith.constant 0 : index
    %c1 = arith.constant 1 : index
    %c0_8 = arith.constant 0 : index
    %4 = vector.load %arg9[%c0_7, %c1, %c0_8] : memref<2x18x256xf32, #tpu.memory_space<vmem>>, vector<2x16x64xf32>
    tpu.vector_store %arg9[%c0_7, %c1, %c0_8], %3 {strides = array<i32>} : memref<2x18x256xf32, #tpu.memory_space<vmem>>, vector<2x16x64xf32>,
    %c0_9 = arith.constant 0 : index
    %c0_10 = arith.constant 0 : index
    %c0_11 = arith.constant 0 : index
    %5 = vector.load %arg1[%c0_9, %c0_10, %c0_11] : memref<3x64x256xf32, #tpu.memory_space<vmem>>, vector<3x64x256xf32>
    %c0_12 = arith.constant 0 : index
    %c0_13 = arith.constant 0 : index
    %6 = vector.load %arg4[%c0_12, %c0_13] : memref<3x256xf32, #tpu.memory_space<vmem>>, vector<1x256xf32>
    %cst_14 = arith.constant 0.000000e+00 : f32
    %7 = vector.broadcast %cst_14 : f32 to vector<32x256xf32>
    %c0_15 = arith.constant 0 : index
    %c0_16 = arith.constant 0 : index
    %c0_17 = arith.constant 0 : index
    %8 = vector.load %arg9[%c0_15, %c0_16, %c0_17] : memref<2x18x256xf32, #tpu.memory_space<vmem>>, vector<2x16x64xf32>
    %9 = vector.shape_cast %8 : vector<2x16x64xf32> to vector<32x64xf32>
    %10 = vector.extract_strided_slice %5 {offsets = [0, 0, 0], sizes = [1, 64, 256], strides = [1, 1, 1]} : vector<3x64x256xf32> to vector<1x64x256xf32>
    %11 = vector.shape_cast %10 : vector<1x64x256xf32> to vector<64x256xf32>
    %cst_18 = arith.constant dense<0.000000e+00> : vector<32x256xf32>
    %12 = tpu.matmul %9, %11, %cst_18 {dimension_numbers = #tpu.dot_dimension_numbers<[1], [0], [0], [1], [0, 0, 1, 1], [], []>} : vector<32x64xf32>, vector<64x256xf32>, vector<32x256xf32> -> vector<32x256xf32>
    %13 = arith.addf %7, %12 : vector<32x256xf32>
    %c0_19 = arith.constant 0 : index
    %c1_20 = arith.constant 1 : index
    %c0_21 = arith.constant 0 : index
    %14 = vector.load %arg9[%c0_19, %c1_20, %c0_21] : memref<2x18x256xf32, #tpu.memory_space<vmem>>, vector<2x16x64xf32>
    %15 = vector.shape_cast %14 : vector<2x16x64xf32> to vector<32x64xf32>
    %16 = vector.extract_strided_slice %5 {offsets = [1, 0, 0], sizes = [1, 64, 256], strides = [1, 1, 1]} : vector<3x64x256xf32> to vector<1x64x256xf32>
    %17 = vector.shape_cast %16 : vector<1x64x256xf32> to vector<64x256xf32>
    %cst_22 = arith.constant dense<0.000000e+00> : vector<32x256xf32>
    %18 = tpu.matmul %15, %17, %cst_22 {dimension_numbers = #tpu.dot_dimension_numbers<[1], [0], [0], [1], [0, 0, 1, 1], [], []>} : vector<32x64xf32>, vector<64x256xf32>, vector<32x256xf32> -> vector<32x256xf32>
    %19 = arith.addf %13, %18 : vector<32x256xf32>
    %c0_23 = arith.constant 0 : index
    %c2 = arith.constant 2 : index
    %c0_24 = arith.constant 0 : index
    %20 = vector.load %arg9[%c0_23, %c2, %c0_24] : memref<2x18x256xf32, #tpu.memory_space<vmem>>, vector<2x16x64xf32>
    %21 = vector.shape_cast %20 : vector<2x16x64xf32> to vector<32x64xf32>
    %22 = vector.extract_strided_slice %5 {offsets = [2, 0, 0], sizes = [1, 64, 256], strides = [1, 1, 1]} : vector<3x64x256xf32> to vector<1x64x256xf32>
    %23 = vector.shape_cast %22 : vector<1x64x256xf32> to vector<64x256xf32>
    %cst_25 = arith.constant dense<0.000000e+00> : vector<32x256xf32>
    %24 = tpu.matmul %21, %23, %cst_25 {dimension_numbers = #tpu.dot_dimension_numbers<[1], [0], [0], [1], [0, 0, 1, 1], [], []>} : vector<32x64xf32>, vector<64x256xf32>, vector<32x256xf32> -> vector<32x256xf32>
    %25 = arith.addf %19, %24 : vector<32x256xf32>
    %26 = vector.broadcast %6 : vector<1x256xf32> to vector<32x256xf32>
    %27 = arith.addf %25, %26 : vector<32x256xf32>
    %cst_26 = arith.constant 0.000000e+00 : f32
    %28 = vector.broadcast %cst_26 : f32 to vector<32x256xf32>
    %29 = arith.cmpf ogt, %27, %28 : vector<32x256xf32>
    %cst_27 = arith.constant 0.00999999977 : f32
    %30 = vector.broadcast %cst_27 : f32 to vector<32x256xf32>
    %31 = arith.mulf %30, %27 : vector<32x256xf32>
    %32 = arith.select %29, %27, %31 : vector<32x256xi1>, vector<32x256xf32>
    %c0_28 = arith.constant 0 : index
    %c0_29 = arith.constant 0 : index
    %33 = vector.load %arg5[%c0_28, %c0_29] : memref<2x256xf32, #tpu.memory_space<vmem>>, vector<1x256xf32>
    %c1_30 = arith.constant 1 : index
    %c0_31 = arith.constant 0 : index
    %34 = vector.load %arg5[%c1_30, %c0_31] : memref<2x256xf32, #tpu.memory_space<vmem>>, vector<1x256xf32>
    %c0_32 = arith.constant 0 : index
    %c0_33 = arith.constant 0 : index
    %35 = vector.load %arg6[%c0_32, %c0_33] : memref<256x16xf32, #tpu.memory_space<vmem>>, vector<256x16xf32>
    %c0_34 = arith.constant 0 : index
    %c0_35 = arith.constant 0 : index
    %36 = vector.load %arg7[%c0_34, %c0_35] : memref<16x256xf32, #tpu.memory_space<vmem>>, vector<16x256xf32>
    %cst_36 = arith.constant dense<0.000000e+00> : vector<256xf32>
    %37 = vector.multi_reduction <add>, %32, %cst_36 [0] : vector<32x256xf32> to vector<256xf32>
    %38 = vector.shape_cast %37 : vector<256xf32> to vector<1x256xf32>
    %cst_37 = arith.constant dense<0.000000e+00> : vector<1x16xf32>
    %39 = tpu.matmul %38, %35, %cst_37 {dimension_numbers = #tpu.dot_dimension_numbers<[1], [0], [0], [1], [0, 0, 1, 1], [], []>} : vector<1x256xf32>, vector<256x16xf32>, vector<1x16xf32> -> vector<1x16xf32>
    %cst_38 = arith.constant 5.120000e+02 : f32
    %40 = vector.broadcast %cst_38 : f32 to vector<1x16xf32>
    %41 = arith.divf %39, %40 : vector<1x16xf32>
    %cst_39 = arith.constant dense<0.000000e+00> : vector<1x256xf32>
    %42 = tpu.matmul %41, %36, %cst_39 {dimension_numbers = #tpu.dot_dimension_numbers<[1], [0], [0], [1], [0, 0, 1, 1], [], []>} : vector<1x16xf32>, vector<16x256xf32>, vector<1x256xf32> -> vector<1x256xf32>
    %43 = vector.broadcast %42 : vector<1x256xf32> to vector<32x256xf32>
    %44 = arith.subf %32, %43 : vector<32x256xf32>
    %45 = arith.mulf %44, %44 : vector<32x256xf32>
    %cst_40 = arith.constant dense<0.000000e+00> : vector<256xf32>
    %46 = vector.multi_reduction <add>, %45, %cst_40 [0] : vector<32x256xf32> to vector<256xf32>
    %47 = vector.shape_cast %46 : vector<256xf32> to vector<1x256xf32>
    %cst_41 = arith.constant dense<0.000000e+00> : vector<1x16xf32>
    %48 = tpu.matmul %47, %35, %cst_41 {dimension_numbers = #tpu.dot_dimension_numbers<[1], [0], [0], [1], [0, 0, 1, 1], [], []>} : vector<1x256xf32>, vector<256x16xf32>, vector<1x16xf32> -> vector<1x16xf32>
    %cst_42 = arith.constant 5.120000e+02 : f32
    %49 = vector.broadcast %cst_42 : f32 to vector<1x16xf32>
    %50 = arith.divf %48, %49 : vector<1x16xf32>
    %cst_43 = arith.constant dense<0.000000e+00> : vector<1x256xf32>
    %51 = tpu.matmul %50, %36, %cst_43 {dimension_numbers = #tpu.dot_dimension_numbers<[1], [0], [0], [1], [0, 0, 1, 1], [], []>} : vector<1x16xf32>, vector<16x256xf32>, vector<1x256xf32> -> vector<1x256xf32>
    %cst_44 = arith.constant 9.99999974E-6 : f32
    %52 = vector.broadcast %cst_44 : f32 to vector<1x256xf32>
    %53 = arith.addf %51, %52 : vector<1x256xf32>
    %54 = math.rsqrt %53 : vector<1x256xf32>
    %55 = arith.mulf %33, %54 : vector<1x256xf32>
    %56 = arith.mulf %42, %55 : vector<1x256xf32>
    %57 = arith.subf %34, %56 : vector<1x256xf32>
    %58 = vector.broadcast %55 : vector<1x256xf32> to vector<32x256xf32>
    %59 = arith.mulf %32, %58 : vector<32x256xf32>
    %60 = vector.broadcast %57 : vector<1x256xf32> to vector<32x256xf32>
    %61 = arith.addf %59, %60 : vector<32x256xf32>
    %62 = vector.shape_cast %61 : vector<32x256xf32> to vector<2x16x256xf32>
    %c0_45 = arith.constant 0 : index
    %c1_46 = arith.constant 1 : index
    %c0_47 = arith.constant 0 : index
    %63 = vector.load %arg9[%c0_45, %c1_46, %c0_47] : memref<2x18x256xf32, #tpu.memory_space<vmem>>, vector<2x16x256xf32>
    tpu.vector_store %arg9[%c0_45, %c1_46, %c0_47], %62 {strides = array<i32>} : memref<2x18x256xf32, #tpu.memory_space<vmem>>, vector<2x16x256xf32>,
    %c0_48 = arith.constant 0 : index
    %c0_49 = arith.constant 0 : index
    %c0_50 = arith.constant 0 : index
    %64 = vector.load %arg2[%c0_48, %c0_49, %c0_50] : memref<3x256x256xf32, #tpu.memory_space<vmem>>, vector<3x256x256xf32>
    %c1_51 = arith.constant 1 : index
    %c0_52 = arith.constant 0 : index
    %65 = vector.load %arg4[%c1_51, %c0_52] : memref<3x256xf32, #tpu.memory_space<vmem>>, vector<1x256xf32>
    %cst_53 = arith.constant 0.000000e+00 : f32
    %66 = vector.broadcast %cst_53 : f32 to vector<32x256xf32>
    %c0_54 = arith.constant 0 : index
    %c0_55 = arith.constant 0 : index
    %c0_56 = arith.constant 0 : index
    %67 = vector.load %arg9[%c0_54, %c0_55, %c0_56] : memref<2x18x256xf32, #tpu.memory_space<vmem>>, vector<2x16x256xf32>
    %68 = vector.shape_cast %67 : vector<2x16x256xf32> to vector<32x256xf32>
    %69 = vector.extract_strided_slice %64 {offsets = [0, 0, 0], sizes = [1, 256, 256], strides = [1, 1, 1]} : vector<3x256x256xf32> to vector<1x256x256xf32>
    %70 = vector.shape_cast %69 : vector<1x256x256xf32> to vector<256x256xf32>
    %cst_57 = arith.constant dense<0.000000e+00> : vector<32x256xf32>
    %71 = tpu.matmul %68, %70, %cst_57 {dimension_numbers = #tpu.dot_dimension_numbers<[1], [0], [0], [1], [0, 0, 1, 1], [], []>} : vector<32x256xf32>, vector<256x256xf32>, vector<32x256xf32> -> vector<32x256xf32>
    %72 = arith.addf %66, %71 : vector<32x256xf32>
    %c0_58 = arith.constant 0 : index
    %c1_59 = arith.constant 1 : index
    %c0_60 = arith.constant 0 : index
    %73 = vector.load %arg9[%c0_58, %c1_59, %c0_60] : memref<2x18x256xf32, #tpu.memory_space<vmem>>, vector<2x16x256xf32>
    %74 = vector.shape_cast %73 : vector<2x16x256xf32> to vector<32x256xf32>
    %75 = vector.extract_strided_slice %64 {offsets = [1, 0, 0], sizes = [1, 256, 256], strides = [1, 1, 1]} : vector<3x256x256xf32> to vector<1x256x256xf32>
    %76 = vector.shape_cast %75 : vector<1x256x256xf32> to vector<256x256xf32>
    %cst_61 = arith.constant dense<0.000000e+00> : vector<32x256xf32>
    %77 = tpu.matmul %74, %76, %cst_61 {dimension_numbers = #tpu.dot_dimension_numbers<[1], [0], [0], [1], [0, 0, 1, 1], [], []>} : vector<32x256xf32>, vector<256x256xf32>, vector<32x256xf32> -> vector<32x256xf32>
    %78 = arith.addf %72, %77 : vector<32x256xf32>
    %c0_62 = arith.constant 0 : index
    %c2_63 = arith.constant 2 : index
    %c0_64 = arith.constant 0 : index
    %79 = vector.load %arg9[%c0_62, %c2_63, %c0_64] : memref<2x18x256xf32, #tpu.memory_space<vmem>>, vector<2x16x256xf32>
    %80 = vector.shape_cast %79 : vector<2x16x256xf32> to vector<32x256xf32>
    %81 = vector.extract_strided_slice %64 {offsets = [2, 0, 0], sizes = [1, 256, 256], strides = [1, 1, 1]} : vector<3x256x256xf32> to vector<1x256x256xf32>
    %82 = vector.shape_cast %81 : vector<1x256x256xf32> to vector<256x256xf32>
    %cst_65 = arith.constant dense<0.000000e+00> : vector<32x256xf32>
    %83 = tpu.matmul %80, %82, %cst_65 {dimension_numbers = #tpu.dot_dimension_numbers<[1], [0], [0], [1], [0, 0, 1, 1], [], []>} : vector<32x256xf32>, vector<256x256xf32>, vector<32x256xf32> -> vector<32x256xf32>
    %84 = arith.addf %78, %83 : vector<32x256xf32>
    %85 = vector.broadcast %65 : vector<1x256xf32> to vector<32x256xf32>
    %86 = arith.addf %84, %85 : vector<32x256xf32>
    %cst_66 = arith.constant 0.000000e+00 : f32
    %87 = vector.broadcast %cst_66 : f32 to vector<32x256xf32>
    %88 = arith.cmpf ogt, %86, %87 : vector<32x256xf32>
    %cst_67 = arith.constant 0.00999999977 : f32
    %89 = vector.broadcast %cst_67 : f32 to vector<32x256xf32>
    %90 = arith.mulf %89, %86 : vector<32x256xf32>
    %91 = arith.select %88, %86, %90 : vector<32x256xi1>, vector<32x256xf32>
    %92 = vector.shape_cast %91 : vector<32x256xf32> to vector<2x16x256xf32>
    %c0_68 = arith.constant 0 : index
    %c1_69 = arith.constant 1 : index
    %c0_70 = arith.constant 0 : index
    %93 = vector.load %arg9[%c0_68, %c1_69, %c0_70] : memref<2x18x256xf32, #tpu.memory_space<vmem>>, vector<2x16x256xf32>
    tpu.vector_store %arg9[%c0_68, %c1_69, %c0_70], %92 {strides = array<i32>} : memref<2x18x256xf32, #tpu.memory_space<vmem>>, vector<2x16x256xf32>,
    %c0_71 = arith.constant 0 : index
    %c0_72 = arith.constant 0 : index
    %c0_73 = arith.constant 0 : index
    %94 = vector.load %arg3[%c0_71, %c0_72, %c0_73] : memref<3x256x256xf32, #tpu.memory_space<vmem>>, vector<3x256x256xf32>
    %c2_74 = arith.constant 2 : index
    %c0_75 = arith.constant 0 : index
    %95 = vector.load %arg4[%c2_74, %c0_75] : memref<3x256xf32, #tpu.memory_space<vmem>>, vector<1x256xf32>
    %cst_76 = arith.constant 0.000000e+00 : f32
    %96 = vector.broadcast %cst_76 : f32 to vector<32x256xf32>
    %c0_77 = arith.constant 0 : index
    %c0_78 = arith.constant 0 : index
    %c0_79 = arith.constant 0 : index
    %97 = vector.load %arg9[%c0_77, %c0_78, %c0_79] : memref<2x18x256xf32, #tpu.memory_space<vmem>>, vector<2x16x256xf32>
    %98 = vector.shape_cast %97 : vector<2x16x256xf32> to vector<32x256xf32>
    %99 = vector.extract_strided_slice %94 {offsets = [0, 0, 0], sizes = [1, 256, 256], strides = [1, 1, 1]} : vector<3x256x256xf32> to vector<1x256x256xf32>
    %100 = vector.shape_cast %99 : vector<1x256x256xf32> to vector<256x256xf32>
    %cst_80 = arith.constant dense<0.000000e+00> : vector<32x256xf32>
    %101 = tpu.matmul %98, %100, %cst_80 {dimension_numbers = #tpu.dot_dimension_numbers<[1], [0], [0], [1], [0, 0, 1, 1], [], []>} : vector<32x256xf32>, vector<256x256xf32>, vector<32x256xf32> -> vector<32x256xf32>
    %102 = arith.addf %96, %101 : vector<32x256xf32>
    %c0_81 = arith.constant 0 : index
    %c1_82 = arith.constant 1 : index
    %c0_83 = arith.constant 0 : index
    %103 = vector.load %arg9[%c0_81, %c1_82, %c0_83] : memref<2x18x256xf32, #tpu.memory_space<vmem>>, vector<2x16x256xf32>
    %104 = vector.shape_cast %103 : vector<2x16x256xf32> to vector<32x256xf32>
    %105 = vector.extract_strided_slice %94 {offsets = [1, 0, 0], sizes = [1, 256, 256], strides = [1, 1, 1]} : vector<3x256x256xf32> to vector<1x256x256xf32>
    %106 = vector.shape_cast %105 : vector<1x256x256xf32> to vector<256x256xf32>
    %cst_84 = arith.constant dense<0.000000e+00> : vector<32x256xf32>
    %107 = tpu.matmul %104, %106, %cst_84 {dimension_numbers = #tpu.dot_dimension_numbers<[1], [0], [0], [1], [0, 0, 1, 1], [], []>} : vector<32x256xf32>, vector<256x256xf32>, vector<32x256xf32> -> vector<32x256xf32>
    %108 = arith.addf %102, %107 : vector<32x256xf32>
    %c0_85 = arith.constant 0 : index
    %c2_86 = arith.constant 2 : index
    %c0_87 = arith.constant 0 : index
    %109 = vector.load %arg9[%c0_85, %c2_86, %c0_87] : memref<2x18x256xf32, #tpu.memory_space<vmem>>, vector<2x16x256xf32>
    %110 = vector.shape_cast %109 : vector<2x16x256xf32> to vector<32x256xf32>
    %111 = vector.extract_strided_slice %94 {offsets = [2, 0, 0], sizes = [1, 256, 256], strides = [1, 1, 1]} : vector<3x256x256xf32> to vector<1x256x256xf32>
    %112 = vector.shape_cast %111 : vector<1x256x256xf32> to vector<256x256xf32>
    %cst_88 = arith.constant dense<0.000000e+00> : vector<32x256xf32>
    %113 = tpu.matmul %110, %112, %cst_88 {dimension_numbers = #tpu.dot_dimension_numbers<[1], [0], [0], [1], [0, 0, 1, 1], [], []>} : vector<32x256xf32>, vector<256x256xf32>, vector<32x256xf32> -> vector<32x256xf32>
    %114 = arith.addf %108, %113 : vector<32x256xf32>
    %115 = vector.broadcast %95 : vector<1x256xf32> to vector<32x256xf32>
    %116 = arith.addf %114, %115 : vector<32x256xf32>
    %cst_89 = arith.constant 0.000000e+00 : f32
    %117 = vector.broadcast %cst_89 : f32 to vector<32x256xf32>
    %118 = arith.cmpf ogt, %116, %117 : vector<32x256xf32>
    %cst_90 = arith.constant 0.00999999977 : f32
    %119 = vector.broadcast %cst_90 : f32 to vector<32x256xf32>
    %120 = arith.mulf %119, %116 : vector<32x256xf32>
    %121 = arith.select %118, %116, %120 : vector<32x256xi1>, vector<32x256xf32>
    %c0_91 = arith.constant 0 : index
    %c0_92 = arith.constant 0 : index
    %122 = vector.load %arg8[%c0_91, %c0_92] : memref<32x256xf32, #tpu.memory_space<vmem>>, vector<32x256xf32>
    tpu.vector_store %arg8[%c0_91, %c0_92], %121 {strides = array<i32>} : memref<32x256xf32, #tpu.memory_space<vmem>>, vector<32x256xf32>,
    return
  }
}

</mosaic_0001>

<llo_original>
// kernel: tpu_custom_call.1
$region0: #{tpu_custom_call.1}
  #allocation0 [shape = 'u32[]', space=smem, size = 0x4, offset = 0x4, fixed_abs, tag = 'smem constant byte address 0x4 - core index']
  #allocation1 [shape = 'u32[144,128]{1,0:T(1,128)}', space=vmem, size = 0x12000, scoped, tag = 'internal scratch']
  #allocation2 [shape = 'f32[2,18,256]{2,1,0:T(8,128)}', space=vmem, size = 0xc000, scoped, tag = 'scratch operand']
  %s0 = inlined_call_operand.vmem [shape: f32[2,16,64], index: 0, kind: input, shape index: {}]
  %s1 = inlined_call_operand.hbm [shape: f32[3,64,256], index: 1, kind: input, shape index: {}]
  %s2 = inlined_call_operand.hbm [shape: f32[3,256,256], index: 2, kind: input, shape index: {}]
  %s3 = inlined_call_operand.hbm [shape: f32[3,256,256], index: 3, kind: input, shape index: {}]
  %s4 = inlined_call_operand.vmem [shape: f32[3,256], index: 4, kind: input, shape index: {}]
  %s5 = inlined_call_operand.vmem [shape: f32[2,256], index: 5, kind: input, shape index: {}]
  %s6 = inlined_call_operand.vmem [shape: f32[256,16], index: 6, kind: input, shape index: {}]
  %s7 = inlined_call_operand.vmem [shape: f32[16,256], index: 7, kind: input, shape index: {}]
  %s8 = inlined_call_operand.hbm [shape: f32[32,256], index: 8, kind: output, shape index: {}]
  %s9 = sld [smem:[#allocation0]]
  $region54: #{tpu_custom_call.1} parent=0
    _
  %s11 = ssub.s32 1, %s9
  %s12 = scalar_select 0, %s11, %s9
  $region1: #{tpu_custom_call.1} parent=0
    #allocation3 [shape = 'u8[196608]{0}', space=vmem, size = 0x30000, scoped, tag = 'input window, operand 1, single buffered']
    #allocation4 [shape = 's32[1]{0}', space=sflag, size = 0x4, scoped, tag = 'scoped memory for tpu_custom_call.1']
    #allocation5 [shape = 's32[1]{0}', space=sflag, size = 0x4, scoped, tag = 'scoped memory for tpu_custom_call.1']
    #allocation6 [shape = 'u8[786432]{0}', space=vmem, size = 0xc0000, scoped, tag = 'input window, operand 2, single buffered']
    #allocation7 [shape = 's32[1]{0}', space=sflag, size = 0x4, scoped, tag = 'scoped memory for tpu_custom_call.1']
    #allocation8 [shape = 'u8[786432]{0}', space=vmem, size = 0xc0000, scoped, tag = 'input window, operand 3, single buffered']
    #allocation9 [shape = 'u8[32768]{0}', space=vmem, size = 0x8000, scoped, tag = 'output window, operand 0, single buffered']
    %13 = vsyncpa [#allocation4], 0
    %14 = vsyncpa [#allocation7], 0
    %15 = vsyncpa [#allocation5], 0
    // Predicated region
    $region2: #{tpu_custom_call.1} parent=1 // pred_check
      _
    $region3: #{tpu_custom_call.1} parent=1 // pred_check_branch
      %17 = sbr.rel (0) target = $region5
    $region4: #{tpu_custom_call.1} parent=1 // pred_region
      _
    $region5: #{tpu_custom_call.1} parent=1 // pred_fallthru
      _
    // Predicated region
    $region6: #{tpu_custom_call.1} parent=1 // pred_check
      _
    $region7: #{tpu_custom_call.1} parent=1 // pred_check_branch
      %19 = sbr.rel (0) target = $region9
    $region8: #{tpu_custom_call.1} parent=1 // pred_region
      %s21 = ssub.s32 6144, 6144
      %22 = vsyncadd [#allocation4], %s21
      %s23 = sshll.u32 [#allocation3], 4
      %s24 = int_to_ptr.vmem [resolvable:$true] %s23
      %29 = dma.hbm_to_vmem [thread:$0]  %s1, 6144, %s24, [#allocation4], 256, 256, 16
    $region9: #{tpu_custom_call.1} parent=1 // pred_fallthru
      _
    // Predicated region
    $region10: #{tpu_custom_call.1} parent=1 // pred_check
      _
    $region11: #{tpu_custom_call.1} parent=1 // pred_check_branch
      %31 = sbr.rel (0) target = $region13
    $region12: #{tpu_custom_call.1} parent=1 // pred_region
      %s33 = ssub.s32 24576, 24576
      %34 = vsyncadd [#allocation7], %s33
      %s35 = sshll.u32 [#allocation6], 4
      %s36 = int_to_ptr.vmem [resolvable:$true] %s35
      %41 = dma.hbm_to_vmem [thread:$0]  %s2, 24576, %s36, [#allocation7], 256, 256, 16
    $region13: #{tpu_custom_call.1} parent=1 // pred_fallthru
      _
    // Predicated region
    $region14: #{tpu_custom_call.1} parent=1 // pred_check
      _
    $region15: #{tpu_custom_call.1} parent=1 // pred_check_branch
      %43 = sbr.rel (0) target = $region17
    $region16: #{tpu_custom_call.1} parent=1 // pred_region
      %s45 = ssub.s32 24576, 24576
      %46 = vsyncadd [#allocation7], %s45
      %s47 = sshll.u32 [#allocation8], 4
      %s48 = int_to_ptr.vmem [resolvable:$true] %s47
      %53 = dma.hbm_to_vmem [thread:$0]  %s3, 24576, %s48, [#allocation7], 256, 256, 16
    $region17: #{tpu_custom_call.1} parent=1 // pred_fallthru
      _
    // Predicated region
    $region18: #{tpu_custom_call.1} parent=1 // pred_check
      _
    $region19: #{tpu_custom_call.1} parent=1 // pred_check_branch
      %55 = sbr.rel (0) target = $region21
    $region20: #{tpu_custom_call.1} parent=1 // pred_region
      _
    $region21: #{tpu_custom_call.1} parent=1 // pred_fallthru
      _
    // Predicated region
    $region22: #{tpu_custom_call.1} parent=1 // pred_check
      _
    $region23: #{tpu_custom_call.1} parent=1 // pred_check_branch
      %57 = sbr.rel (0) target = $region25
    $region24: #{tpu_custom_call.1} parent=1 // pred_region
      _
    $region25: #{tpu_custom_call.1} parent=1 // pred_fallthru
      _
    // Predicated region
    $region26: #{tpu_custom_call.1} parent=1 // pred_check
      _
    $region27: #{tpu_custom_call.1} parent=1 // pred_check_branch
      %59 = sbr.rel (0) target = $region29
    $region28: #{tpu_custom_call.1} parent=1 // pred_region
      _
    $region29: #{tpu_custom_call.1} parent=1 // pred_fallthru
      _
    // Predicated region
    $region30: #{tpu_custom_call.1} parent=1 // pred_check
      _
    $region31: #{tpu_custom_call.1} parent=1 // pred_check_branch
      %61 = sbr.rel (0) target = $region33
    $region32: #{tpu_custom_call.1} parent=1 // pred_region
      _
    $region33: #{tpu_custom_call.1} parent=1 // pred_fallthru
      _
    // Predicated region
    $region34: #{tpu_custom_call.1} parent=1 // pred_check
      _
    $region35: #{tpu_custom_call.1} parent=1 // pred_check_branch
      %63 = sbr.rel (0) target = $region37
    $region36: #{tpu_custom_call.1} parent=1 // pred_region
      %64 = dma.done [#allocation4], 6144
    $region37: #{tpu_custom_call.1} parent=1 // pred_fallthru
      _
    // Predicated region
    $region38: #{tpu_custom_call.1} parent=1 // pred_check
      _
    $region39: #{tpu_custom_call.1} parent=1 // pred_check_branch
      %66 = sbr.rel (0) target = $region41
    $region40: #{tpu_custom_call.1} parent=1 // pred_region
      %67 = dma.done [#allocation7], 24576
    $region41: #{tpu_custom_call.1} parent=1 // pred_fallthru
      _
    // Predicated region
    $region42: #{tpu_custom_call.1} parent=1 // pred_check
      _
    $region43: #{tpu_custom_call.1} parent=1 // pred_check_branch
      %69 = sbr.rel (0) target = $region45
    $region44: #{tpu_custom_call.1} parent=1 // pred_region
      %70 = dma.done [#allocation7], 24576
    $region45: #{tpu_custom_call.1} parent=1 // pred_fallthru
      _
    %v71 = vlaneseq
    %vm72 = vcmp.ge.s32.totalorder %v71, 0
    %vm73 = vcmp.lt.s32.totalorder %v71, 256
    %vm74 = vmand %vm72, %vm73
    %75 = vst.msk [vmem:[#allocation2] ss:$8 sm:$0x3] %vm74, 0.0
    %76 = vst.msk [vmem:[#allocation2] ss:$8 sm:$0x0] %vm74, 0.0
    %s77 = scalar_lea.vmem [#allocation2], 48
    %78 = vst.msk [vmem:[%s77] ss:$8 sm:$0x3] %vm74, 0.0
    %79 = vst.msk [vmem:[%s77] ss:$8 sm:$0x0] %vm74, 0.0
    %s80 = scalar_lea.vmem [#allocation2], 33
    %81 = vst.msk [vmem:[%s80] ss:$8 sm:$0x3] %vm74, 0.0
    %82 = vst.msk [vmem:[%s80] ss:$8 sm:$0x0] %vm74, 0.0
    %s83 = scalar_lea.vmem [#allocation2], 81
    %84 = vst.msk [vmem:[%s83] ss:$8 sm:$0x3] %vm74, 0.0
    %85 = vst.msk [vmem:[%s83] ss:$8 sm:$0x0] %vm74, 0.0
    %v86 = vld [vmem:[%s0] sm:$0xff]
    %v87 = vld [vmem:[%s0 + $0x8] sm:$0xff]
    %v88 = vld [vmem:[%s0 + $0x10] sm:$0xff]
    %v89 = vld [vmem:[%s0 + $0x18] sm:$0xff]
    %vm94 = vcmask 1040384
    %v95 = vrot.slane %v86, 7
    %v96 = vrot.slane %v87, 7
    %v97 = vsel %vm94, %v95, %v96
    %v98 = vrot.slane %v88, 7
    %v99 = vrot.slane %v89, 7
    %v100 = vsel %vm94, %v98, %v99
    %vm107 = vcmask 523265
    %108 = vst.msk [vmem:[#allocation2] sm:$0xfe] %vm107, %v95
    %vm109 = vcmask 523264
    %110 = vst.msk [vmem:[#allocation2 + $0x10] sm:$0xff] %vm109, %v97
    %vm111 = vcmask 516096
    %112 = vst.msk [vmem:[#allocation2 + $0x20] sm:$0x1] %vm111, %v96
    %113 = vst.msk [vmem:[#allocation2 + $0x30] sm:$0xfe] %vm107, %v98
    %114 = vst.msk [vmem:[#allocation2 + $0x40] sm:$0xff] %vm109, %v100
    %115 = vst.msk [vmem:[#allocation2 + $0x50] sm:$0x1] %vm111, %v99
    %v116 = vld [vmem:[#allocation3] sm:$0xff]
    %v117 = vld [vmem:[#allocation3 + $0x8] sm:$0xff]
    %v118 = vld [vmem:[#allocation3 + $0x10] sm:$0xff]
    %v119 = vld [vmem:[#allocation3 + $0x18] sm:$0xff]
    %v120 = vld [vmem:[#allocation3 + $0x20] sm:$0xff]
    %v121 = vld [vmem:[#allocation3 + $0x28] sm:$0xff]
    %v122 = vld [vmem:[#allocation3 + $0x30] sm:$0xff]
    %v123 = vld [vmem:[#allocation3 + $0x38] sm:$0xff]
    %v124 = vld [vmem:[#allocation3 + $0x40] sm:$0xff]
    %v125 = vld [vmem:[#allocation3 + $0x48] sm:$0xff]
    %v126 = vld [vmem:[#allocation3 + $0x50] sm:$0xff]
    %v127 = vld [vmem:[#allocation3 + $0x58] sm:$0xff]
    %v128 = vld [vmem:[#allocation3 + $0x60] sm:$0xff]
    %v129 = vld [vmem:[#allocation3 + $0x68] sm:$0xff]
    %v130 = vld [vmem:[#allocation3 + $0x70] sm:$0xff]
    %v131 = vld [vmem:[#allocation3 + $0x78] sm:$0xff]
    %v132 = vld [vmem:[#allocation3 + $0x80] sm:$0xff]
    %v133 = vld [vmem:[#allocation3 + $0x88] sm:$0xff]
    %v134 = vld [vmem:[#allocation3 + $0x90] sm:$0xff]
    %v135 = vld [vmem:[#allocation3 + $0x98] sm:$0xff]
    %v136 = vld [vmem:[#allocation3 + $0xa0] sm:$0xff]
    %v137 = vld [vmem:[#allocation3 + $0xa8] sm:$0xff]
    %v138 = vld [vmem:[#allocation3 + $0xb0] sm:$0xff]
    %v139 = vld [vmem:[#allocation3 + $0xb8] sm:$0xff]
    %v140 = vld [vmem:[#allocation3 + $0xc0] sm:$0xff]
    %v141 = vld [vmem:[#allocation3 + $0xc8] sm:$0xff]
    %v142 = vld [vmem:[#allocation3 + $0xd0] sm:$0xff]
    %v143 = vld [vmem:[#allocation3 + $0xd8] sm:$0xff]
    %v144 = vld [vmem:[#allocation3 + $0xe0] sm:$0xff]
    %v145 = vld [vmem:[#allocation3 + $0xe8] sm:$0xff]
    %v146 = vld [vmem:[#allocation3 + $0xf0] sm:$0xff]
    %v147 = vld [vmem:[#allocation3 + $0xf8] sm:$0xff]
    %v148 = vld [vmem:[#allocation3 + $0x100] sm:$0xff]
    %v149 = vld [vmem:[#allocation3 + $0x108] sm:$0xff]
    %v150 = vld [vmem:[#allocation3 + $0x110] sm:$0xff]
    %v151 = vld [vmem:[#allocation3 + $0x118] sm:$0xff]
    %v152 = vld [vmem:[#allocation3 + $0x120] sm:$0xff]
    %v153 = vld [vmem:[#allocation3 + $0x128] sm:$0xff]
    %v154 = vld [vmem:[#allocation3 + $0x130] sm:$0xff]
    %v155 = vld [vmem:[#allocation3 + $0x138] sm:$0xff]
    %v156 = vld [vmem:[#allocation3 + $0x140] sm:$0xff]
    %v157 = vld [vmem:[#allocation3 + $0x148] sm:$0xff]
    %v158 = vld [vmem:[#allocation3 + $0x150] sm:$0xff]
    %v159 = vld [vmem:[#allocation3 + $0x158] sm:$0xff]
    %v160 = vld [vmem:[#allocation3 + $0x160] sm:$0xff]
    %v161 = vld [vmem:[#allocation3 + $0x168] sm:$0xff]
    %v162 = vld [vmem:[#allocation3 + $0x170] sm:$0xff]
    %v163 = vld [vmem:[#allocation3 + $0x178] sm:$0xff]
    %v164 = vld [vmem:[%s4] ss:$4 sm:$0x3]
    %v165 = vld [vmem:[#allocation2] sm:$0xff]
    %v166 = vld [vmem:[#allocation2 + $0x10] sm:$0xff]
    %v167 = vld [vmem:[#allocation2 + $0x30] sm:$0xff]
    %v168 = vld [vmem:[#allocation2 + $0x40] sm:$0xff]
    %v169 = vld [vmem:[#allocation2] sm:$0xfe]
    %v170 = vld [vmem:[#allocation2 + $0x20] sm:$0x1]
    %v171 = vld [vmem:[#allocation2 + $0x30] sm:$0xfe]
    %v172 = vld [vmem:[#allocation2 + $0x50] sm:$0x1]
    %vm179 = vcmask 1046528
    %v180 = vrot.slane %v169, 1
    %v181 = vrot.slane %v166, 1
    %v182 = vsel %vm179, %v180, %v181
    %v183 = vrot.slane %v170, 1
    %v184 = vsel %vm179, %v181, %v183
    %v185 = vrot.slane %v171, 1
    %v186 = vrot.slane %v168, 1
    %v187 = vsel %vm179, %v185, %v186
    %v188 = vrot.slane %v172, 1
    %v189 = vsel %vm179, %v186, %v188
    %v190 = vsel %vm109, %v182, 0
    %v192 = vsel %vm109, %v184, 0
    %v194 = vsel %vm109, %v187, 0
    %v196 = vsel %vm109, %v189, 0
    %198 = vmatprep.subr.mxu0 %v133
    %199 = vmatpush1.msra.mxu0 %v132
    %200 = vmatprep.subr.mxu0 %v135
    %201 = vmatpush1.msra.mxu0 %v134
    %202 = vmatprep.subr.mxu0 %v137
    %203 = vmatpush1.msra.mxu0 %v136
    %204 = vmatprep.subr.mxu0 %v139
    %205 = vmatpush1.msra.mxu0 %v138
    %206 = vmatprep.subr.mxu0 %v141
    %207 = vmatpush1.msra.mxu0 %v140
    %208 = vmatprep.subr.mxu0 %v143
    %209 = vmatpush1.msra.mxu0 %v142
    %210 = vmatprep.subr.mxu0 %v145
    %211 = vmatpush1.msra.mxu0 %v144
    %212 = vmatprep.subr.mxu0 %v147
    %213 = vmatpush1.msra.mxu0 %v146
    %214 = vmatprep.subr.mxu0 0.0
    %215 = vmatpush1.msra.mxu0 0.0
    %216 = vmatprep.subr.mxu0 0.0
    %217 = vmatpush1.msra.mxu0 0.0
    %218 = vmatprep.subr.mxu0 0.0
    %219 = vmatpush1.msra.mxu0 0.0
    %220 = vmatprep.subr.mxu0 0.0
    %221 = vmatpush1.msra.mxu0 0.0
    %222 = vmatprep.subr.mxu0 0.0
    %223 = vmatpush1.msra.mxu0 0.0
    %224 = vmatprep.subr.mxu0 0.0
    %225 = vmatpush1.msra.mxu0 0.0
    %226 = vmatprep.subr.mxu0 0.0
    %227 = vmatpush1.msra.mxu0 0.0
    %228 = vmatprep.subr.mxu0 0.0
    %229 = vmatpush1.msra.mxu0 0.0
    %230 = vmatprep.subr.mxu0 0.0
    %231 = vmatpush1.msra.mxu0 0.0
    %232 = vmatprep.subr.mxu0 0.0
    %233 = vmatpush1.msra.mxu0 0.0
    %234 = vmatprep.subr.mxu0 0.0
    %235 = vmatpush1.msra.mxu0 0.0
    %236 = vmatprep.subr.mxu0 0.0
    %237 = vmatpush1.msra.mxu0 0.0
    %238 = vmatprep.subr.mxu0 0.0
    %239 = vmatpush1.msra.mxu0 0.0
    %240 = vmatprep.subr.mxu0 0.0
    %241 = vmatpush1.msra.mxu0 0.0
    %242 = vmatprep.subr.mxu0 0.0
    %243 = vmatpush1.msra.mxu0 0.0
    %244 = vmatprep.subr.mxu0 0.0
    %245 = vmatpush1.msra.mxu0 0.0
    %246 = vmatprep.subr.mxu0 0.0
    %247 = vmatpush1.msra.mxu0 0.0
    %248 = vmatprep.subr.mxu0 0.0
    %249 = vmatpush1.msra.mxu0 0.0
    %250 = vmatprep.subr.mxu0 0.0
    %251 = vmatpush1.msra.mxu0 0.0
    %252 = vmatprep.subr.mxu0 0.0
    %253 = vmatpush1.msra.mxu0 0.0
    %254 = vmatprep.subr.mxu0 0.0
    %255 = vmatpush1.msra.mxu0 0.0
    %256 = vmatprep.subr.mxu0 0.0
    %257 = vmatpush1.msra.mxu0 0.0
    %258 = vmatprep.subr.mxu0 0.0
    %259 = vmatpush1.msra.mxu0 0.0
    %260 = vmatprep.subr.mxu0 0.0
    %261 = vmatpush1.msra.mxu0 0.0
    %262 = vmatprep.mubr.f32.mxu0 0.0
    %263 = vmatmul.mubr.f32.gmra.mrb[0].mxu0 %v190
    %v264 = vpop.f32.mrb[0].mxu0
    %v265 = vadd.f32 0.0, %v264
    %v266 = vpop.f32.mrb[0].mxu0
    %v267 = vadd.f32 0.0, %v266
    %268 = vmatprep.mubr.f32.mxu0 0.0
    %269 = vmatmul.mubr.f32.gmra.mrb[0].mxu0 %v192
    %v270 = vpop.f32.mrb[0].mxu0
    %v271 = vadd.f32 0.0, %v270
    %v272 = vpop.f32.mrb[0].mxu0
    %v273 = vadd.f32 0.0, %v272
    %274 = vmatprep.mubr.f32.mxu0 0.0
    %275 = vmatmul.mubr.f32.gmra.mrb[0].mxu0 %v194
    %v276 = vpop.f32.mrb[0].mxu0
    %v277 = vadd.f32 0.0, %v276
    %v278 = vpop.f32.mrb[0].mxu0
    %v279 = vadd.f32 0.0, %v278
    %280 = vmatprep.mubr.f32.mxu0 0.0
    %281 = vmatmul.mubr.f32.gmra.mrb[0].mxu0 %v196
    %v282 = vpop.f32.mrb[0].mxu0
    %v283 = vadd.f32 0.0, %v282
    %v284 = vpop.f32.mrb[0].mxu0
    %v285 = vadd.f32 0.0, %v284
    %286 = vdwg.mxu0
    %v288 = vsel %vm109, %v165, 0
    %v290 = vsel %vm109, %v166, 0
    %v293 = vsel %vm109, %v167, 0
    %v295 = vsel %vm109, %v168, 0
    %297 = vmatprep.subr.mxu0 %v117
    %298 = vmatpush1.msra.mxu0 %v116
    %299 = vmatprep.subr.mxu0 %v119
    %300 = vmatpush1.msra.mxu0 %v118
    %301 = vmatprep.subr.mxu0 %v121
    %302 = vmatpush1.msra.mxu0 %v120
    %303 = vmatprep.subr.mxu0 %v123
    %304 = vmatpush1.msra.mxu0 %v122
    %305 = vmatprep.subr.mxu0 %v125
    %306 = vmatpush1.msra.mxu0 %v124
    %307 = vmatprep.subr.mxu0 %v127
    %308 = vmatpush1.msra.mxu0 %v126
    %309 = vmatprep.subr.mxu0 %v129
    %310 = vmatpush1.msra.mxu0 %v128
    %311 = vmatprep.subr.mxu0 %v131
    %312 = vmatpush1.msra.mxu0 %v130
    %313 = vmatprep.subr.mxu0 0.0
    %314 = vmatpush1.msra.mxu0 0.0
    %315 = vmatprep.subr.mxu0 0.0
    %316 = vmatpush1.msra.mxu0 0.0
    %317 = vmatprep.subr.mxu0 0.0
    %318 = vmatpush1.msra.mxu0 0.0
    %319 = vmatprep.subr.mxu0 0.0
    %320 = vmatpush1.msra.mxu0 0.0
    %321 = vmatprep.subr.mxu0 0.0
    %322 = vmatpush1.msra.mxu0 0.0
    %323 = vmatprep.subr.mxu0 0.0
    %324 = vmatpush1.msra.mxu0 0.0
    %325 = vmatprep.subr.mxu0 0.0
    %326 = vmatpush1.msra.mxu0 0.0
    %327 = vmatprep.subr.mxu0 0.0
    %328 = vmatpush1.msra.mxu0 0.0
    %329 = vmatprep.subr.mxu0 0.0
    %330 = vmatpush1.msra.mxu0 0.0
    %331 = vmatprep.subr.mxu0 0.0
    %332 = vmatpush1.msra.mxu0 0.0
    %333 = vmatprep.subr.mxu0 0.0
    %334 = vmatpush1.msra.mxu0 0.0
    %335 = vmatprep.subr.mxu0 0.0
    %336 = vmatpush1.msra.mxu0 0.0
    %337 = vmatprep.subr.mxu0 0.0
    %338 = vmatpush1.msra.mxu0 0.0
    %339 = vmatprep.subr.mxu0 0.0
    %340 = vmatpush1.msra.mxu0 0.0
    %341 = vmatprep.subr.mxu0 0.0
    %342 = vmatpush1.msra.mxu0 0.0
    %343 = vmatprep.subr.mxu0 0.0
    %344 = vmatpush1.msra.mxu0 0.0
    %345 = vmatprep.subr.mxu0 0.0
    %346 = vmatpush1.msra.mxu0 0.0
    %347 = vmatprep.subr.mxu0 0.0
    %348 = vmatpush1.msra.mxu0 0.0
    %349 = vmatprep.subr.mxu0 0.0
    %350 = vmatpush1.msra.mxu0 0.0
    %351 = vmatprep.subr.mxu0 0.0
    %352 = vmatpush1.msra.mxu0 0.0
    %353 = vmatprep.subr.mxu0 0.0
    %354 = vmatpush1.msra.mxu0 0.0
    %355 = vmatprep.subr.mxu0 0.0
    %356 = vmatpush1.msra.mxu0 0.0
    %357 = vmatprep.subr.mxu0 0.0
    %358 = vmatpush1.msra.mxu0 0.0
    %359 = vmatprep.subr.mxu0 0.0
    %360 = vmatpush1.msra.mxu0 0.0
    %361 = vmatprep.mubr.f32.mxu0 0.0
    %362 = vmatmul.mubr.f32.gmra.mrb[0].mxu0 %v288
    %v363 = vpop.f32.mrb[0].mxu0
    %v364 = vadd.f32 %v265, %v363
    %v365 = vpop.f32.mrb[0].mxu0
    %v366 = vadd.f32 %v267, %v365
    %367 = vmatprep.mubr.f32.mxu0 0.0
    %368 = vmatmul.mubr.f32.gmra.mrb[0].mxu0 %v290
    %v369 = vpop.f32.mrb[0].mxu0
    %v370 = vadd.f32 %v271, %v369
    %v371 = vpop.f32.mrb[0].mxu0
    %v372 = vadd.f32 %v273, %v371
    %373 = vmatprep.mubr.f32.mxu0 0.0
    %374 = vmatmul.mubr.f32.gmra.mrb[0].mxu0 %v293
    %v375 = vpop.f32.mrb[0].mxu0
    %v376 = vadd.f32 %v277, %v375
    %v377 = vpop.f32.mrb[0].mxu0
    %v378 = vadd.f32 %v279, %v377
    %379 = vmatprep.mubr.f32.mxu0 0.0
    %380 = vmatmul.mubr.f32.gmra.mrb[0].mxu0 %v295
    %v381 = vpop.f32.mrb[0].mxu0
    %v382 = vadd.f32 %v283, %v381
    %v383 = vpop.f32.mrb[0].mxu0
    %v384 = vadd.f32 %v285, %v383
    %385 = vdwg.mxu0
    %v386 = vld [vmem:[#allocation2] sm:$0xfc]
    %v387 = vld [vmem:[#allocation2 + $0x20] sm:$0x3]
    %v388 = vld [vmem:[#allocation2 + $0x30] sm:$0xfc]
    %v389 = vld [vmem:[#allocation2 + $0x50] sm:$0x3]
    %vm394 = vcmask 1045504
    %v395 = vrot.slane %v386, 2
    %v396 = vrot.slane %v166, 2
    %v397 = vsel %vm394, %v395, %v396
    %v398 = vrot.slane %v387, 2
    %v399 = vsel %vm394, %v396, %v398
    %v400 = vrot.slane %v388, 2
    %v401 = vrot.slane %v168, 2
    %v402 = vsel %vm394, %v400, %v401
    %v403 = vrot.slane %v389, 2
    %v404 = vsel %vm394, %v401, %v403
    %v405 = vsel %vm109, %v397, 0
    %v407 = vsel %vm109, %v399, 0
    %v409 = vsel %vm109, %v402, 0
    %v411 = vsel %vm109, %v404, 0
    %413 = vmatprep.subr.mxu0 %v149
    %414 = vmatpush1.msra.mxu0 %v148
    %415 = vmatprep.subr.mxu0 %v151
    %416 = vmatpush1.msra.mxu0 %v150
    %417 = vmatprep.subr.mxu0 %v153
    %418 = vmatpush1.msra.mxu0 %v152
    %419 = vmatprep.subr.mxu0 %v155
    %420 = vmatpush1.msra.mxu0 %v154
    %421 = vmatprep.subr.mxu0 %v157
    %422 = vmatpush1.msra.mxu0 %v156
    %423 = vmatprep.subr.mxu0 %v159
    %424 = vmatpush1.msra.mxu0 %v158
    %425 = vmatprep.subr.mxu0 %v161
    %426 = vmatpush1.msra.mxu0 %v160
    %427 = vmatprep.subr.mxu0 %v163
    %428 = vmatpush1.msra.mxu0 %v162
    %429 = vmatprep.subr.mxu0 0.0
    %430 = vmatpush1.msra.mxu0 0.0
    %431 = vmatprep.subr.mxu0 0.0
    %432 = vmatpush1.msra.mxu0 0.0
    %433 = vmatprep.subr.mxu0 0.0
    %434 = vmatpush1.msra.mxu0 0.0
    %435 = vmatprep.subr.mxu0 0.0
    %436 = vmatpush1.msra.mxu0 0.0
    %437 = vmatprep.subr.mxu0 0.0
    %438 = vmatpush1.msra.mxu0 0.0
    %439 = vmatprep.subr.mxu0 0.0
    %440 = vmatpush1.msra.mxu0 0.0
    %441 = vmatprep.subr.mxu0 0.0
    %442 = vmatpush1.msra.mxu0 0.0
    %443 = vmatprep.subr.mxu0 0.0
    %444 = vmatpush1.msra.mxu0 0.0
    %445 = vmatprep.subr.mxu0 0.0
    %446 = vmatpush1.msra.mxu0 0.0
    %447 = vmatprep.subr.mxu0 0.0
    %448 = vmatpush1.msra.mxu0 0.0
    %449 = vmatprep.subr.mxu0 0.0
    %450 = vmatpush1.msra.mxu0 0.0
    %451 = vmatprep.subr.mxu0 0.0
    %452 = vmatpush1.msra.mxu0 0.0
    %453 = vmatprep.subr.mxu0 0.0
    %454 = vmatpush1.msra.mxu0 0.0
    %455 = vmatprep.subr.mxu0 0.0
    %456 = vmatpush1.msra.mxu0 0.0
    %457 = vmatprep.subr.mxu0 0.0
    %458 = vmatpush1.msra.mxu0 0.0
    %459 = vmatprep.subr.mxu0 0.0
    %460 = vmatpush1.msra.mxu0 0.0
    %461 = vmatprep.subr.mxu0 0.0
    %462 = vmatpush1.msra.mxu0 0.0
    %463 = vmatprep.subr.mxu0 0.0
    %464 = vmatpush1.msra.mxu0 0.0
    %465 = vmatprep.subr.mxu0 0.0
    %466 = vmatpush1.msra.mxu0 0.0
    %467 = vmatprep.subr.mxu0 0.0
    %468 = vmatpush1.msra.mxu0 0.0
    %469 = vmatprep.subr.mxu0 0.0
    %470 = vmatpush1.msra.mxu0 0.0
    %471 = vmatprep.subr.mxu0 0.0
    %472 = vmatpush1.msra.mxu0 0.0
    %473 = vmatprep.subr.mxu0 0.0
    %474 = vmatpush1.msra.mxu0 0.0
    %475 = vmatprep.subr.mxu0 0.0
    %476 = vmatpush1.msra.mxu0 0.0
    %477 = vmatprep.mubr.f32.mxu0 0.0
    %478 = vmatmul.mubr.f32.gmra.mrb[0].mxu0 %v405
    %v479 = vpop.f32.mrb[0].mxu0
    %v480 = vadd.f32 0.0, %v479
    %v481 = vpop.f32.mrb[0].mxu0
    %v482 = vadd.f32 0.0, %v481
    %483 = vmatprep.mubr.f32.mxu0 0.0
    %484 = vmatmul.mubr.f32.gmra.mrb[0].mxu0 %v407
    %v485 = vpop.f32.mrb[0].mxu0
    %v486 = vadd.f32 0.0, %v485
    %v487 = vpop.f32.mrb[0].mxu0
    %v488 = vadd.f32 0.0, %v487
    %489 = vmatprep.mubr.f32.mxu0 0.0
    %490 = vmatmul.mubr.f32.gmra.mrb[0].mxu0 %v409
    %v491 = vpop.f32.mrb[0].mxu0
    %v492 = vadd.f32 0.0, %v491
    %v493 = vpop.f32.mrb[0].mxu0
    %v494 = vadd.f32 0.0, %v493
    %495 = vmatprep.mubr.f32.mxu0 0.0
    %496 = vmatmul.mubr.f32.gmra.mrb[0].mxu0 %v411
    %v497 = vpop.f32.mrb[0].mxu0
    %v498 = vadd.f32 0.0, %v497
    %v499 = vpop.f32.mrb[0].mxu0
    %v500 = vadd.f32 0.0, %v499
    %501 = vdwg.mxu0
    %v502 = vadd.f32 %v364, %v480
    %v503 = vadd.f32 %v366, %v482
    %v504 = vadd.f32 %v370, %v486
    %v505 = vadd.f32 %v372, %v488
    %v506 = vadd.f32 %v376, %v492
    %v507 = vadd.f32 %v378, %v494
    %v508 = vadd.f32 %v382, %v498
    %v509 = vadd.f32 %v384, %v500
    %v511 = vlaneseq
    %v512 = vshrl.u32 %v511, 7
    %v513 = vsub.s32 0, %v512
    %v514 = vrot.slane %v164, %v513
    %v515 = vlaneseq
    %v516 = vshrl.u32 %v515, 7
    %v517 = vsub.s32 1, %v516
    %v518 = vrot.slane %v164, %v517
    %v521 = vadd.f32 %v502, %v514
    %v522 = vadd.f32 %v503, %v518
    %v523 = vadd.f32 %v504, %v514
    %v524 = vadd.f32 %v505, %v518
    %v525 = vadd.f32 %v506, %v514
    %v526 = vadd.f32 %v507, %v518
    %v527 = vadd.f32 %v508, %v514
    %v528 = vadd.f32 %v509, %v518
    %vm529 = vcmp.gt.f32.partialorder %v521, 0.0
    %vm530 = vcmp.gt.f32.partialorder %v522, 0.0
    %vm531 = vcmp.gt.f32.partialorder %v523, 0.0
    %vm532 = vcmp.gt.f32.partialorder %v524, 0.0
    %vm533 = vcmp.gt.f32.partialorder %v525, 0.0
    %vm534 = vcmp.gt.f32.partialorder %v526, 0.0
    %vm535 = vcmp.gt.f32.partialorder %v527, 0.0
    %vm536 = vcmp.gt.f32.partialorder %v528, 0.0
    %v537 = vmul.f32 %v521, 0.01
    %v538 = vmul.f32 %v522, 0.01
    %v539 = vmul.f32 %v523, 0.01
    %v540 = vmul.f32 %v524, 0.01
    %v541 = vmul.f32 %v525, 0.01
    %v542 = vmul.f32 %v526, 0.01
    %v543 = vmul.f32 %v527, 0.01
    %v544 = vmul.f32 %v528, 0.01
    %v545 = vsel %vm529, %v521, %v537
    %v546 = vsel %vm530, %v522, %v538
    %v547 = vsel %vm531, %v523, %v539
    %v548 = vsel %vm532, %v524, %v540
    %v549 = vsel %vm533, %v525, %v541
    %v550 = vsel %vm534, %v526, %v542
    %v551 = vsel %vm535, %v527, %v543
    %v552 = vsel %vm536, %v528, %v544
    %v553 = vld [vmem:[%s5] ss:$2 sm:$0x3]
    %s554 = scalar_lea.vmem %s5, 1
    %v555 = vld [vmem:[%s554] ss:$2 sm:$0x3]
    %v556 = vld [vmem:[%s6] sm:$0xff]
    %v557 = vld [vmem:[%s6 + $0x8] sm:$0xff]
    %v558 = vld [vmem:[%s6 + $0x10] sm:$0xff]
    %v559 = vld [vmem:[%s6 + $0x18] sm:$0xff]
    %v560 = vld [vmem:[%s6 + $0x20] sm:$0xff]
    %v561 = vld [vmem:[%s6 + $0x28] sm:$0xff]
    %v562 = vld [vmem:[%s6 + $0x30] sm:$0xff]
    %v563 = vld [vmem:[%s6 + $0x38] sm:$0xff]
    %v564 = vld [vmem:[%s6 + $0x40] sm:$0xff]
    %v565 = vld [vmem:[%s6 + $0x48] sm:$0xff]
    %v566 = vld [vmem:[%s6 + $0x50] sm:$0xff]
    %v567 = vld [vmem:[%s6 + $0x58] sm:$0xff]
    %v568 = vld [vmem:[%s6 + $0x60] sm:$0xff]
    %v569 = vld [vmem:[%s6 + $0x68] sm:$0xff]
    %v570 = vld [vmem:[%s6 + $0x70] sm:$0xff]
    %v571 = vld [vmem:[%s6 + $0x78] sm:$0xff]
    %v572 = vld [vmem:[%s6 + $0x80] sm:$0xff]
    %v573 = vld [vmem:[%s6 + $0x88] sm:$0xff]
    %v574 = vld [vmem:[%s6 + $0x90] sm:$0xff]
    %v575 = vld [vmem:[%s6 + $0x98] sm:$0xff]
    %v576 = vld [vmem:[%s6 + $0xa0] sm:$0xff]
    %v577 = vld [vmem:[%s6 + $0xa8] sm:$0xff]
    %v578 = vld [vmem:[%s6 + $0xb0] sm:$0xff]
    %v579 = vld [vmem:[%s6 + $0xb8] sm:$0xff]
    %v580 = vld [vmem:[%s6 + $0xc0] sm:$0xff]
    %v581 = vld [vmem:[%s6 + $0xc8] sm:$0xff]
    %v582 = vld [vmem:[%s6 + $0xd0] sm:$0xff]
    %v583 = vld [vmem:[%s6 + $0xd8] sm:$0xff]
    %v584 = vld [vmem:[%s6 + $0xe0] sm:$0xff]
    %v585 = vld [vmem:[%s6 + $0xe8] sm:$0xff]
    %v586 = vld [vmem:[%s6 + $0xf0] sm:$0xff]
    %v587 = vld [vmem:[%s6 + $0xf8] sm:$0xff]
    %v588 = vld [vmem:[%s7] sm:$0xff]
    %v589 = vld [vmem:[%s7 + $0x8] sm:$0xff]
    %v590 = vld [vmem:[%s7 + $0x10] sm:$0xff]
    %v591 = vld [vmem:[%s7 + $0x18] sm:$0xff]
    %v592 = vadd.f32 %v545, %v547
    %v593 = vadd.f32 %v592, %v549
    %v594 = vadd.f32 %v593, %v551
    %v595 = vrot.slane %v594, 4
    %v596 = vadd.f32 %v594, %v595
    %v597 = vrot.slane %v596, 2
    %v598 = vadd.f32 %v596, %v597
    %v599 = vrot.slane %v598, 1
    %v600 = vadd.f32 %v598, %v599
    %v601 = vadd.f32 %v546, %v548
    %v602 = vadd.f32 %v601, %v550
    %v603 = vadd.f32 %v602, %v552
    %v604 = vrot.slane %v603, 4
    %v605 = vadd.f32 %v603, %v604
    %v606 = vrot.slane %v605, 2
    %v607 = vadd.f32 %v605, %v606
    %v608 = vrot.slane %v607, 1
    %v609 = vadd.f32 %v607, %v608
    %610 = vmatprep.subr.mxu0 0.0
    %611 = vmatpush1.msra.mxu0 %v556
    %612 = vmatprep.subr.mxu0 0.0
    %613 = vmatpush1.msra.mxu0 %v557
    %614 = vmatprep.subr.mxu0 0.0
    %615 = vmatpush1.msra.mxu0 %v558
    %616 = vmatprep.subr.mxu0 0.0
    %617 = vmatpush1.msra.mxu0 %v559
    %618 = vmatprep.subr.mxu0 0.0
    %619 = vmatpush1.msra.mxu0 %v560
    %620 = vmatprep.subr.mxu0 0.0
    %621 = vmatpush1.msra.mxu0 %v561
    %622 = vmatprep.subr.mxu0 0.0
    %623 = vmatpush1.msra.mxu0 %v562
    %624 = vmatprep.subr.mxu0 0.0
    %625 = vmatpush1.msra.mxu0 %v563
    %626 = vmatprep.subr.mxu0 0.0
    %627 = vmatpush1.msra.mxu0 %v564
    %628 = vmatprep.subr.mxu0 0.0
    %629 = vmatpush1.msra.mxu0 %v565
    %630 = vmatprep.subr.mxu0 0.0
    %631 = vmatpush1.msra.mxu0 %v566
    %632 = vmatprep.subr.mxu0 0.0
    %633 = vmatpush1.msra.mxu0 %v567
    %634 = vmatprep.subr.mxu0 0.0
    %635 = vmatpush1.msra.mxu0 %v568
    %636 = vmatprep.subr.mxu0 0.0
    %637 = vmatpush1.msra.mxu0 %v569
    %638 = vmatprep.subr.mxu0 0.0
    %639 = vmatpush1.msra.mxu0 %v570
    %640 = vmatprep.subr.mxu0 0.0
    %641 = vmatpush1.msra.mxu0 %v571
    %642 = vmatprep.subr.mxu0 0.0
    %643 = vmatpush1.msra.mxu0 %v572
    %644 = vmatprep.subr.mxu0 0.0
    %645 = vmatpush1.msra.mxu0 %v573
    %646 = vmatprep.subr.mxu0 0.0
    %647 = vmatpush1.msra.mxu0 %v574
    %648 = vmatprep.subr.mxu0 0.0
    %649 = vmatpush1.msra.mxu0 %v575
    %650 = vmatprep.subr.mxu0 0.0
    %651 = vmatpush1.msra.mxu0 %v576
    %652 = vmatprep.subr.mxu0 0.0
    %653 = vmatpush1.msra.mxu0 %v577
    %654 = vmatprep.subr.mxu0 0.0
    %655 = vmatpush1.msra.mxu0 %v578
    %656 = vmatprep.subr.mxu0 0.0
    %657 = vmatpush1.msra.mxu0 %v579
    %658 = vmatprep.subr.mxu0 0.0
    %659 = vmatpush1.msra.mxu0 %v580
    %660 = vmatprep.subr.mxu0 0.0
    %661 = vmatpush1.msra.mxu0 %v581
    %662 = vmatprep.subr.mxu0 0.0
    %663 = vmatpush1.msra.mxu0 %v582
    %664 = vmatprep.subr.mxu0 0.0
    %665 = vmatpush1.msra.mxu0 %v583
    %666 = vmatprep.subr.mxu0 0.0
    %667 = vmatpush1.msra.mxu0 %v584
    %668 = vmatprep.subr.mxu0 0.0
    %669 = vmatpush1.msra.mxu0 %v585
    %670 = vmatprep.subr.mxu0 0.0
    %671 = vmatpush1.msra.mxu0 %v586
    %672 = vmatprep.subr.mxu0 0.0
    %673 = vmatpush1.msra.mxu0 %v587
    %674 = vmatprep.mubr.f32.mxu0 %v609
    %675 = vmatmul.mubr.f32.gmra.mrb[0].mxu0 %v600
    %v676 = vpop.f32.mrb[0].mxu0
    %v677 = vadd.f32 0.0, %v676
    %v678 = vpop.f32.mrb[0].mxu0
    %679 = vdwg.mxu0
    %v680 = vrcp.pop 512.0
    %v681 = vmul.f32 %v677, %v680
    %vm682 = vcmask 130048
    %v684 = vsel %vm682, %v681, 0
    %686 = vmatprep.subr.mxu0 %v589
    %687 = vmatpush1.msra.mxu0 %v588
    %688 = vmatprep.subr.mxu0 %v591
    %689 = vmatpush1.msra.mxu0 %v590
    %690 = vmatprep.subr.mxu0 0.0
    %691 = vmatpush1.msra.mxu0 0.0
    %692 = vmatprep.subr.mxu0 0.0
    %693 = vmatpush1.msra.mxu0 0.0
    %694 = vmatprep.subr.mxu0 0.0
    %695 = vmatpush1.msra.mxu0 0.0
    %696 = vmatprep.subr.mxu0 0.0
    %697 = vmatpush1.msra.mxu0 0.0
    %698 = vmatprep.subr.mxu0 0.0
    %699 = vmatpush1.msra.mxu0 0.0
    %700 = vmatprep.subr.mxu0 0.0
    %701 = vmatpush1.msra.mxu0 0.0
    %702 = vmatprep.subr.mxu0 0.0
    %703 = vmatpush1.msra.mxu0 0.0
    %704 = vmatprep.subr.mxu0 0.0
    %705 = vmatpush1.msra.mxu0 0.0
    %706 = vmatprep.subr.mxu0 0.0
    %707 = vmatpush1.msra.mxu0 0.0
    %708 = vmatprep.subr.mxu0 0.0
    %709 = vmatpush1.msra.mxu0 0.0
    %710 = vmatprep.subr.mxu0 0.0
    %711 = vmatpush1.msra.mxu0 0.0
    %712 = vmatprep.subr.mxu0 0.0
    %713 = vmatpush1.msra.mxu0 0.0
    %714 = vmatprep.subr.mxu0 0.0
    %715 = vmatpush1.msra.mxu0 0.0
    %716 = vmatprep.subr.mxu0 0.0
    %717 = vmatpush1.msra.mxu0 0.0
    %718 = vmatprep.subr.mxu0 0.0
    %719 = vmatpush1.msra.mxu0 0.0
    %720 = vmatprep.subr.mxu0 0.0
    %721 = vmatpush1.msra.mxu0 0.0
    %722 = vmatprep.subr.mxu0 0.0
    %723 = vmatpush1.msra.mxu0 0.0
    %724 = vmatprep.subr.mxu0 0.0
    %725 = vmatpush1.msra.mxu0 0.0
    %726 = vmatprep.subr.mxu0 0.0
    %727 = vmatpush1.msra.mxu0 0.0
    %728 = vmatprep.subr.mxu0 0.0
    %729 = vmatpush1.msra.mxu0 0.0
    %730 = vmatprep.subr.mxu0 0.0
    %731 = vmatpush1.msra.mxu0 0.0
    %732 = vmatprep.subr.mxu0 0.0
    %733 = vmatpush1.msra.mxu0 0.0
    %734 = vmatprep.subr.mxu0 0.0
    %735 = vmatpush1.msra.mxu0 0.0
    %736 = vmatprep.subr.mxu0 0.0
    %737 = vmatpush1.msra.mxu0 0.0
    %738 = vmatprep.subr.mxu0 0.0
    %739 = vmatpush1.msra.mxu0 0.0
    %740 = vmatprep.subr.mxu0 0.0
    %741 = vmatpush1.msra.mxu0 0.0
    %742 = vmatprep.subr.mxu0 0.0
    %743 = vmatpush1.msra.mxu0 0.0
    %744 = vmatprep.subr.mxu0 0.0
    %745 = vmatpush1.msra.mxu0 0.0
    %746 = vmatprep.subr.mxu0 0.0
    %747 = vmatpush1.msra.mxu0 0.0
    %748 = vmatprep.subr.mxu0 0.0
    %749 = vmatpush1.msra.mxu0 0.0
    %750 = vmatprep.mubr.f32.mxu0 0.0
    %751 = vmatmul.mubr.f32.gmra.mrb[0].mxu0 %v684
    %v752 = vpop.f32.mrb[0].mxu0
    %v753 = vadd.f32 0.0, %v752
    %v754 = vpop.f32.mrb[0].mxu0
    %v755 = vadd.f32 0.0, %v754
    %756 = vdwg.mxu0
    %v757 = vlaneseq
    %v758 = vshrl.u32 %v757, 7
    %v759 = vsub.s32 0, %v758
    %v760 = vrot.slane %v753, %v759
    %v761 = vlaneseq
    %v762 = vshrl.u32 %v761, 7
    %v763 = vsub.s32 0, %v762
    %v764 = vrot.slane %v755, %v763
    %v765 = vsub.f32 %v545, %v760
    %v766 = vsub.f32 %v546, %v764
    %v767 = vsub.f32 %v547, %v760
    %v768 = vsub.f32 %v548, %v764
    %v769 = vsub.f32 %v549, %v760
    %v770 = vsub.f32 %v550, %v764
    %v771 = vsub.f32 %v551, %v760
    %v772 = vsub.f32 %v552, %v764
    %v773 = vmul.f32 %v765, %v765
    %v774 = vmul.f32 %v766, %v766
    %v775 = vmul.f32 %v767, %v767
    %v776 = vmul.f32 %v768, %v768
    %v777 = vmul.f32 %v769, %v769
    %v778 = vmul.f32 %v770, %v770
    %v779 = vmul.f32 %v771, %v771
    %v780 = vmul.f32 %v772, %v772
    %v781 = vadd.f32 %v773, %v775
    %v782 = vadd.f32 %v781, %v777
    %v783 = vadd.f32 %v782, %v779
    %v784 = vrot.slane %v783, 4
    %v785 = vadd.f32 %v783, %v784
    %v786 = vrot.slane %v785, 2
    %v787 = vadd.f32 %v785, %v786
    %v788 = vrot.slane %v787, 1
    %v789 = vadd.f32 %v787, %v788
    %v790 = vadd.f32 %v774, %v776
    %v791 = vadd.f32 %v790, %v778
    %v792 = vadd.f32 %v791, %v780
    %v793 = vrot.slane %v792, 4
    %v794 = vadd.f32 %v792, %v793
    %v795 = vrot.slane %v794, 2
    %v796 = vadd.f32 %v794, %v795
    %v797 = vrot.slane %v796, 1
    %v798 = vadd.f32 %v796, %v797
    %799 = vmatprep.subr.mxu0 0.0
    %800 = vmatpush1.msra.mxu0 %v556
    %801 = vmatprep.subr.mxu0 0.0
    %802 = vmatpush1.msra.mxu0 %v557
    %803 = vmatprep.subr.mxu0 0.0
    %804 = vmatpush1.msra.mxu0 %v558
    %805 = vmatprep.subr.mxu0 0.0
    %806 = vmatpush1.msra.mxu0 %v559
    %807 = vmatprep.subr.mxu0 0.0
    %808 = vmatpush1.msra.mxu0 %v560
    %809 = vmatprep.subr.mxu0 0.0
    %810 = vmatpush1.msra.mxu0 %v561
    %811 = vmatprep.subr.mxu0 0.0
    %812 = vmatpush1.msra.mxu0 %v562
    %813 = vmatprep.subr.mxu0 0.0
    %814 = vmatpush1.msra.mxu0 %v563
    %815 = vmatprep.subr.mxu0 0.0
    %816 = vmatpush1.msra.mxu0 %v564
    %817 = vmatprep.subr.mxu0 0.0
    %818 = vmatpush1.msra.mxu0 %v565
    %819 = vmatprep.subr.mxu0 0.0
    %820 = vmatpush1.msra.mxu0 %v566
    %821 = vmatprep.subr.mxu0 0.0
    %822 = vmatpush1.msra.mxu0 %v567
    %823 = vmatprep.subr.mxu0 0.0
    %824 = vmatpush1.msra.mxu0 %v568
    %825 = vmatprep.subr.mxu0 0.0
    %826 = vmatpush1.msra.mxu0 %v569
    %827 = vmatprep.subr.mxu0 0.0
    %828 = vmatpush1.msra.mxu0 %v570
    %829 = vmatprep.subr.mxu0 0.0
    %830 = vmatpush1.msra.mxu0 %v571
    %831 = vmatprep.subr.mxu0 0.0
    %832 = vmatpush1.msra.mxu0 %v572
    %833 = vmatprep.subr.mxu0 0.0
    %834 = vmatpush1.msra.mxu0 %v573
    %835 = vmatprep.subr.mxu0 0.0
    %836 = vmatpush1.msra.mxu0 %v574
    %837 = vmatprep.subr.mxu0 0.0
    %838 = vmatpush1.msra.mxu0 %v575
    %839 = vmatprep.subr.mxu0 0.0
    %840 = vmatpush1.msra.mxu0 %v576
    %841 = vmatprep.subr.mxu0 0.0
    %842 = vmatpush1.msra.mxu0 %v577
    %843 = vmatprep.subr.mxu0 0.0
    %844 = vmatpush1.msra.mxu0 %v578
    %845 = vmatprep.subr.mxu0 0.0
    %846 = vmatpush1.msra.mxu0 %v579
    %847 = vmatprep.subr.mxu0 0.0
    %848 = vmatpush1.msra.mxu0 %v580
    %849 = vmatprep.subr.mxu0 0.0
    %850 = vmatpush1.msra.mxu0 %v581
    %851 = vmatprep.subr.mxu0 0.0
    %852 = vmatpush1.msra.mxu0 %v582
    %853 = vmatprep.subr.mxu0 0.0
    %854 = vmatpush1.msra.mxu0 %v583
    %855 = vmatprep.subr.mxu0 0.0
    %856 = vmatpush1.msra.mxu0 %v584
    %857 = vmatprep.subr.mxu0 0.0
    %858 = vmatpush1.msra.mxu0 %v585
    %859 = vmatprep.subr.mxu0 0.0
    %860 = vmatpush1.msra.mxu0 %v586
    %861 = vmatprep.subr.mxu0 0.0
    %862 = vmatpush1.msra.mxu0 %v587
    %863 = vmatprep.mubr.f32.mxu0 %v798
    %864 = vmatmul.mubr.f32.gmra.mrb[0].mxu0 %v789
    %v865 = vpop.f32.mrb[0].mxu0
    %v866 = vadd.f32 0.0, %v865
    %v867 = vpop.f32.mrb[0].mxu0
    %868 = vdwg.mxu0
    %v869 = vmul.f32 %v866, %v680
    %v871 = vsel %vm682, %v869, 0
    %873 = vmatprep.subr.mxu0 %v589
    %874 = vmatpush1.msra.mxu0 %v588
    %875 = vmatprep.subr.mxu0 %v591
    %876 = vmatpush1.msra.mxu0 %v590
    %877 = vmatprep.subr.mxu0 0.0
    %878 = vmatpush1.msra.mxu0 0.0
    %879 = vmatprep.subr.mxu0 0.0
    %880 = vmatpush1.msra.mxu0 0.0
    %881 = vmatprep.subr.mxu0 0.0
    %882 = vmatpush1.msra.mxu0 0.0
    %883 = vmatprep.subr.mxu0 0.0
    %884 = vmatpush1.msra.mxu0 0.0
    %885 = vmatprep.subr.mxu0 0.0
    %886 = vmatpush1.msra.mxu0 0.0
    %887 = vmatprep.subr.mxu0 0.0
    %888 = vmatpush1.msra.mxu0 0.0
    %889 = vmatprep.subr.mxu0 0.0
    %890 = vmatpush1.msra.mxu0 0.0
    %891 = vmatprep.subr.mxu0 0.0
    %892 = vmatpush1.msra.mxu0 0.0
    %893 = vmatprep.subr.mxu0 0.0
    %894 = vmatpush1.msra.mxu0 0.0
    %895 = vmatprep.subr.mxu0 0.0
    %896 = vmatpush1.msra.mxu0 0.0
    %897 = vmatprep.subr.mxu0 0.0
    %898 = vmatpush1.msra.mxu0 0.0
    %899 = vmatprep.subr.mxu0 0.0
    %900 = vmatpush1.msra.mxu0 0.0
    %901 = vmatprep.subr.mxu0 0.0
    %902 = vmatpush1.msra.mxu0 0.0
    %903 = vmatprep.subr.mxu0 0.0
    %904 = vmatpush1.msra.mxu0 0.0
    %905 = vmatprep.subr.mxu0 0.0
    %906 = vmatpush1.msra.mxu0 0.0
    %907 = vmatprep.subr.mxu0 0.0
    %908 = vmatpush1.msra.mxu0 0.0
    %909 = vmatprep.subr.mxu0 0.0
    %910 = vmatpush1.msra.mxu0 0.0
    %911 = vmatprep.subr.mxu0 0.0
    %912 = vmatpush1.msra.mxu0 0.0
    %913 = vmatprep.subr.mxu0 0.0
    %914 = vmatpush1.msra.mxu0 0.0
    %915 = vmatprep.subr.mxu0 0.0
    %916 = vmatpush1.msra.mxu0 0.0
    %917 = vmatprep.subr.mxu0 0.0
    %918 = vmatpush1.msra.mxu0 0.0
    %919 = vmatprep.subr.mxu0 0.0
    %920 = vmatpush1.msra.mxu0 0.0
    %921 = vmatprep.subr.mxu0 0.0
    %922 = vmatpush1.msra.mxu0 0.0
    %923 = vmatprep.subr.mxu0 0.0
    %924 = vmatpush1.msra.mxu0 0.0
    %925 = vmatprep.subr.mxu0 0.0
    %926 = vmatpush1.msra.mxu0 0.0
    %927 = vmatprep.subr.mxu0 0.0
    %928 = vmatpush1.msra.mxu0 0.0
    %929 = vmatprep.subr.mxu0 0.0
    %930 = vmatpush1.msra.mxu0 0.0
    %931 = vmatprep.subr.mxu0 0.0
    %932 = vmatpush1.msra.mxu0 0.0
    %933 = vmatprep.subr.mxu0 0.0
    %934 = vmatpush1.msra.mxu0 0.0
    %935 = vmatprep.subr.mxu0 0.0
    %936 = vmatpush1.msra.mxu0 0.0
    %937 = vmatprep.mubr.f32.mxu0 0.0
    %938 = vmatmul.mubr.f32.gmra.mrb[0].mxu0 %v871
    %v939 = vpop.f32.mrb[0].mxu0
    %v940 = vadd.f32 1e-05, %v939
    %v941 = vpop.f32.mrb[0].mxu0
    %v942 = vadd.f32 1e-05, %v941
    %943 = vdwg.mxu0
    %v944 = vrsqrt.pop %v940
    %v945 = vrsqrt.pop %v942
    %v948 = vcombine.low %v944, %v945
    %v950 = vunpack.c.l.s4 1966171168
    %v951 = vunpack.c.0.s8 %v950
    %v952 = vlaneseq
    %v953 = vshrl.u32 %v952, 7
    %v954 = vsub.s32 %v951, %v953
    %v955 = vrot.slane %v948, %v954
    %v957 = vunpack.c.l.s4 1966171168
    %v958 = vunpack.c.0.s8 %v957
    %v959 = vlaneseq
    %v960 = vshrl.u32 %v959, 7
    %v961 = vsub.s32 %v958, %v960
    %v962 = vrot.slane %v955, %v961
    %v964 = vmul.f32 %v553, %v962
    %v966 = vlaneseq
    %v967 = vshrl.u32 %v966, 7
    %v968 = vsub.s32 0, %v967
    %v969 = vrot.slane %v964, %v968
    %v970 = vlaneseq
    %v971 = vshrl.u32 %v970, 7
    %v972 = vsub.s32 1, %v971
    %v973 = vrot.slane %v964, %v972
    %v976 = vmul.f32 %v753, %v969
    %v977 = vmul.f32 %v755, %v973
    %v980 = vcombine.low %v976, %v977
    %v982 = vunpack.c.l.s4 1966171168
    %v983 = vunpack.c.0.s8 %v982
    %v984 = vlaneseq
    %v985 = vshrl.u32 %v984, 7
    %v986 = vsub.s32 %v983, %v985
    %v987 = vrot.slane %v980, %v986
    %v989 = vunpack.c.l.s4 1966171168
    %v990 = vunpack.c.0.s8 %v989
    %v991 = vlaneseq
    %v992 = vshrl.u32 %v991, 7
    %v993 = vsub.s32 %v990, %v992
    %v994 = vrot.slane %v987, %v993
    %v996 = vsub.f32 %v555, %v994
    %v997 = vmul.f32 %v545, %v969
    %v998 = vmul.f32 %v546, %v973
    %v999 = vmul.f32 %v547, %v969
    %v1000 = vmul.f32 %v548, %v973
    %v1001 = vmul.f32 %v549, %v969
    %v1002 = vmul.f32 %v550, %v973
    %v1003 = vmul.f32 %v551, %v969
    %v1004 = vmul.f32 %v552, %v973
    %v1006 = vlaneseq
    %v1007 = vshrl.u32 %v1006, 7
    %v1008 = vsub.s32 0, %v1007
    %v1009 = vrot.slane %v996, %v1008
    %v1010 = vlaneseq
    %v1011 = vshrl.u32 %v1010, 7
    %v1012 = vsub.s32 1, %v1011
    %v1013 = vrot.slane %v996, %v1012
    %v1016 = vadd.f32 %v997, %v1009
    %v1017 = vadd.f32 %v998, %v1013
    %v1018 = vadd.f32 %v999, %v1009
    %v1019 = vadd.f32 %v1000, %v1013
    %v1020 = vadd.f32 %v1001, %v1009
    %v1021 = vadd.f32 %v1002, %v1013
    %v1022 = vadd.f32 %v1003, %v1009
    %v1023 = vadd.f32 %v1004, %v1013
    %v1032 = vrot.slane %v1016, 7
    %v1033 = vrot.slane %v1017, 7
    %v1034 = vrot.slane %v1018, 7
    %v1035 = vsel %vm94, %v1032, %v1034
    %v1036 = vrot.slane %v1019, 7
    %v1037 = vsel %vm94, %v1033, %v1036
    %v1038 = vrot.slane %v1020, 7
    %v1039 = vrot.slane %v1021, 7
    %v1040 = vrot.slane %v1022, 7
    %v1041 = vsel %vm94, %v1038, %v1040
    %v1042 = vrot.slane %v1023, 7
    %v1043 = vsel %vm94, %v1039, %v1042
    %1056 = vst [vmem:[#allocation2] sm:$0xfe] %v1032
    %1057 = vst [vmem:[#allocation2 + $0x8] sm:$0xfe] %v1033
    %1058 = vst [vmem:[#allocation2 + $0x10] sm:$0xff] %v1035
    %1059 = vst [vmem:[#allocation2 + $0x18] sm:$0xff] %v1037
    %1060 = vst [vmem:[#allocation2 + $0x20] sm:$0x1] %v1034
    %1061 = vst [vmem:[#allocation2 + $0x28] sm:$0x1] %v1036
    %1062 = vst [vmem:[#allocation2 + $0x30] sm:$0xfe] %v1038
    %1063 = vst [vmem:[#allocation2 + $0x38] sm:$0xfe] %v1039
    %1064 = vst [vmem:[#allocation2 + $0x40] sm:$0xff] %v1041
    %1065 = vst [vmem:[#allocation2 + $0x48] sm:$0xff] %v1043
    %1066 = vst [vmem:[#allocation2 + $0x50] sm:$0x1] %v1040
    %1067 = vst [vmem:[#allocation2 + $0x58] sm:$0x1] %v1042
    %v1068 = vld [vmem:[#allocation6] sm:$0xff]
    %v1069 = vld [vmem:[#allocation6 + $0x8] sm:$0xff]
    %v1070 = vld [vmem:[#allocation6 + $0x10] sm:$0xff]
    %v1071 = vld [vmem:[#allocation6 + $0x18] sm:$0xff]
    %v1072 = vld [vmem:[#allocation6 + $0x20] sm:$0xff]
    %v1073 = vld [vmem:[#allocation6 + $0x28] sm:$0xff]
    %v1074 = vld [vmem:[#allocation6 + $0x30] sm:$0xff]
    %v1075 = vld [vmem:[#allocation6 + $0x38] sm:$0xff]
    %v1076 = vld [vmem:[#allocation6 + $0x40] sm:$0xff]
    %v1077 = vld [vmem:[#allocation6 + $0x48] sm:$0xff]
    %v1078 = vld [vmem:[#allocation6 + $0x50] sm:$0xff]
    %v1079 = vld [vmem:[#allocation6 + $0x58] sm:$0xff]
    %v1080 = vld [vmem:[#allocation6 + $0x60] sm:$0xff]
    %v1081 = vld [vmem:[#allocation6 + $0x68] sm:$0xff]
    %v1082 = vld [vmem:[#allocation6 + $0x70] sm:$0xff]
    %v1083 = vld [vmem:[#allocation6 + $0x78] sm:$0xff]
    %v1084 = vld [vmem:[#allocation6 + $0x80] sm:$0xff]
    %v1085 = vld [vmem:[#allocation6 + $0x88] sm:$0xff]
    %v1086 = vld [vmem:[#allocation6 + $0x90] sm:$0xff]
    %v1087 = vld [vmem:[#allocation6 + $0x98] sm:$0xff]
    %v1088 = vld [vmem:[#allocation6 + $0xa0] sm:$0xff]
    %v1089 = vld [vmem:[#allocation6 + $0xa8] sm:$0xff]
    %v1090 = vld [vmem:[#allocation6 + $0xb0] sm:$0xff]
    %v1091 = vld [vmem:[#allocation6 + $0xb8] sm:$0xff]
    %v1092 = vld [vmem:[#allocation6 + $0xc0] sm:$0xff]
    %v1093 = vld [vmem:[#allocation6 + $0xc8] sm:$0xff]
    %v1094 = vld [vmem:[#allocation6 + $0xd0] sm:$0xff]
    %v1095 = vld [vmem:[#allocation6 + $0xd8] sm:$0xff]
    %v1096 = vld [vmem:[#allocation6 + $0xe0] sm:$0xff]
    %v1097 = vld [vmem:[#allocation6 + $0xe8] sm:$0xff]
    %v1098 = vld [vmem:[#allocation6 + $0xf0] sm:$0xff]
    %v1099 = vld [vmem:[#allocation6 + $0xf8] sm:$0xff]
    %v1100 = vld [vmem:[#allocation6 + $0x100] sm:$0xff]
    %v1101 = vld [vmem:[#allocation6 + $0x108] sm:$0xff]
    %v1102 = vld [vmem:[#allocation6 + $0x110] sm:$0xff]
    %v1103 = vld [vmem:[#allocation6 + $0x118] sm:$0xff]
    %v1104 = vld [vmem:[#allocation6 + $0x120] sm:$0xff]
    %v1105 = vld [vmem:[#allocation6 + $0x128] sm:$0xff]
    %v1106 = vld [vmem:[#allocation6 + $0x130] sm:$0xff]
    %v1107 = vld [vmem:[#allocation6 + $0x138] sm:$0xff]
    %v1108 = vld [vmem:[#allocation6 + $0x140] sm:$0xff]
    %v1109 = vld [vmem:[#allocation6 + $0x148] sm:$0xff]
    %v1110 = vld [vmem:[#allocation6 + $0x150] sm:$0xff]
    %v1111 = vld [vmem:[#allocation6 + $0x158] sm:$0xff]
    %v1112 = vld [vmem:[#allocation6 + $0x160] sm:$0xff]
    %v1113 = vld [vmem:[#allocation6 + $0x168] sm:$0xff]
    %v1114 = vld [vmem:[#allocation6 + $0x170] sm:$0xff]
    %v1115 = vld [vmem:[#allocation6 + $0x178] sm:$0xff]
    %v1116 = vld [vmem:[#allocation6 + $0x180] sm:$0xff]
    %v1117 = vld [vmem:[#allocation6 + $0x188] sm:$0xff]
    %v1118 = vld [vmem:[#allocation6 + $0x190] sm:$0xff]
    %v1119 = vld [vmem:[#allocation6 + $0x198] sm:$0xff]
    %v1120 = vld [vmem:[#allocation6 + $0x1a0] sm:$0xff]
    %v1121 = vld [vmem:[#allocation6 + $0x1a8] sm:$0xff]
    %v1122 = vld [vmem:[#allocation6 + $0x1b0] sm:$0xff]
    %v1123 = vld [vmem:[#allocation6 + $0x1b8] sm:$0xff]
    %v1124 = vld [vmem:[#allocation6 + $0x1c0] sm:$0xff]
    %v1125 = vld [vmem:[#allocation6 + $0x1c8] sm:$0xff]
    %v1126 = vld [vmem:[#allocation6 + $0x1d0] sm:$0xff]
    %v1127 = vld [vmem:[#allocation6 + $0x1d8] sm:$0xff]
    %v1128 = vld [vmem:[#allocation6 + $0x1e0] sm:$0xff]
    %v1129 = vld [vmem:[#allocation6 + $0x1e8] sm:$0xff]
    %v1130 = vld [vmem:[#allocation6 + $0x1f0] sm:$0xff]
    %v1131 = vld [vmem:[#allocation6 + $0x1f8] sm:$0xff]
    %v1132 = vld [vmem:[#allocation6 + $0x200] sm:$0xff]
    %v1133 = vld [vmem:[#allocation6 + $0x208] sm:$0xff]
    %v1134 = vld [vmem:[#allocation6 + $0x210] sm:$0xff]
    %v1135 = vld [vmem:[#allocation6 + $0x218] sm:$0xff]
    %v1136 = vld [vmem:[#allocation6 + $0x220] sm:$0xff]
    %v1137 = vld [vmem:[#allocation6 + $0x228] sm:$0xff]
    %v1138 = vld [vmem:[#allocation6 + $0x230] sm:$0xff]
    %v1139 = vld [vmem:[#allocation6 + $0x238] sm:$0xff]
    %v1140 = vld [vmem:[#allocation6 + $0x240] sm:$0xff]
    %v1141 = vld [vmem:[#allocation6 + $0x248] sm:$0xff]
    %v1142 = vld [vmem:[#allocation6 + $0x250] sm:$0xff]
    %v1143 = vld [vmem:[#allocation6 + $0x258] sm:$0xff]
    %v1144 = vld [vmem:[#allocation6 + $0x260] sm:$0xff]
    %v1145 = vld [vmem:[#allocation6 + $0x268] sm:$0xff]
    %v1146 = vld [vmem:[#allocation6 + $0x270] sm:$0xff]
    %v1147 = vld [vmem:[#allocation6 + $0x278] sm:$0xff]
    %v1148 = vld [vmem:[#allocation6 + $0x280] sm:$0xff]
    %v1149 = vld [vmem:[#allocation6 + $0x288] sm:$0xff]
    %v1150 = vld [vmem:[#allocation6 + $0x290] sm:$0xff]
    %v1151 = vld [vmem:[#allocation6 + $0x298] sm:$0xff]
    %v1152 = vld [vmem:[#allocation6 + $0x2a0] sm:$0xff]
    %v1153 = vld [vmem:[#allocation6 + $0x2a8] sm:$0xff]
    %v1154 = vld [vmem:[#allocation6 + $0x2b0] sm:$0xff]
    %v1155 = vld [vmem:[#allocation6 + $0x2b8] sm:$0xff]
    %v1156 = vld [vmem:[#allocation6 + $0x2c0] sm:$0xff]
    %v1157 = vld [vmem:[#allocation6 + $0x2c8] sm:$0xff]
    %v1158 = vld [vmem:[#allocation6 + $0x2d0] sm:$0xff]
    %v1159 = vld [vmem:[#allocation6 + $0x2d8] sm:$0xff]
    %v1160 = vld [vmem:[#allocation6 + $0x2e0] sm:$0xff]
    %v1161 = vld [vmem:[#allocation6 + $0x2e8] sm:$0xff]
    %v1162 = vld [vmem:[#allocation6 + $0x2f0] sm:$0xff]
    %v1163 = vld [vmem:[#allocation6 + $0x2f8] sm:$0xff]
    %v1164 = vld [vmem:[#allocation6 + $0x300] sm:$0xff]
    %v1165 = vld [vmem:[#allocation6 + $0x308] sm:$0xff]
    %v1166 = vld [vmem:[#allocation6 + $0x310] sm:$0xff]
    %v1167 = vld [vmem:[#allocation6 + $0x318] sm:$0xff]
    %v1168 = vld [vmem:[#allocation6 + $0x320] sm:$0xff]
    %v1169 = vld [vmem:[#allocation6 + $0x328] sm:$0xff]
    %v1170 = vld [vmem:[#allocation6 + $0x330] sm:$0xff]
    %v1171 = vld [vmem:[#allocation6 + $0x338] sm:$0xff]
    %v1172 = vld [vmem:[#allocation6 + $0x340] sm:$0xff]
    %v1173 = vld [vmem:[#allocation6 + $0x348] sm:$0xff]
    %v1174 = vld [vmem:[#allocation6 + $0x350] sm:$0xff]
    %v1175 = vld [vmem:[#allocation6 + $0x358] sm:$0xff]
    %v1176 = vld [vmem:[#allocation6 + $0x360] sm:$0xff]
    %v1177 = vld [vmem:[#allocation6 + $0x368] sm:$0xff]
    %v1178 = vld [vmem:[#allocation6 + $0x370] sm:$0xff]
    %v1179 = vld [vmem:[#allocation6 + $0x378] sm:$0xff]
    %v1180 = vld [vmem:[#allocation6 + $0x380] sm:$0xff]
    %v1181 = vld [vmem:[#allocation6 + $0x388] sm:$0xff]
    %v1182 = vld [vmem:[#allocation6 + $0x390] sm:$0xff]
    %v1183 = vld [vmem:[#allocation6 + $0x398] sm:$0xff]
    %v1184 = vld [vmem:[#allocation6 + $0x3a0] sm:$0xff]
    %v1185 = vld [vmem:[#allocation6 + $0x3a8] sm:$0xff]
    %v1186 = vld [vmem:[#allocation6 + $0x3b0] sm:$0xff]
    %v1187 = vld [vmem:[#allocation6 + $0x3b8] sm:$0xff]
    %v1188 = vld [vmem:[#allocation6 + $0x3c0] sm:$0xff]
    %v1189 = vld [vmem:[#allocation6 + $0x3c8] sm:$0xff]
    %v1190 = vld [vmem:[#allocation6 + $0x3d0] sm:$0xff]
    %v1191 = vld [vmem:[#allocation6 + $0x3d8] sm:$0xff]
    %v1192 = vld [vmem:[#allocation6 + $0x3e0] sm:$0xff]
    %v1193 = vld [vmem:[#allocation6 + $0x3e8] sm:$0xff]
    %v1194 = vld [vmem:[#allocation6 + $0x3f0] sm:$0xff]
    %v1195 = vld [vmem:[#allocation6 + $0x3f8] sm:$0xff]
    %v1196 = vld [vmem:[#allocation6 + $0x400] sm:$0xff]
    %v1197 = vld [vmem:[#allocation6 + $0x408] sm:$0xff]
    %v1198 = vld [vmem:[#allocation6 + $0x410] sm:$0xff]
    %v1199 = vld [vmem:[#allocation6 + $0x418] sm:$0xff]
    %v1200 = vld [vmem:[#allocation6 + $0x420] sm:$0xff]
    %v1201 = vld [vmem:[#allocation6 + $0x428] sm:$0xff]
    %v1202 = vld [vmem:[#allocation6 + $0x430] sm:$0xff]
    %v1203 = vld [vmem:[#allocation6 + $0x438] sm:$0xff]
    %v1204 = vld [vmem:[#allocation6 + $0x440] sm:$0xff]
    %v1205 = vld [vmem:[#allocation6 + $0x448] sm:$0xff]
    %v1206 = vld [vmem:[#allocation6 + $0x450] sm:$0xff]
    %v1207 = vld [vmem:[#allocation6 + $0x458] sm:$0xff]
    %v1208 = vld [vmem:[#allocation6 + $0x460] sm:$0xff]
    %v1209 = vld [vmem:[#allocation6 + $0x468] sm:$0xff]
    %v1210 = vld [vmem:[#allocation6 + $0x470] sm:$0xff]
    %v1211 = vld [vmem:[#allocation6 + $0x478] sm:$0xff]
    %v1212 = vld [vmem:[#allocation6 + $0x480] sm:$0xff]
    %v1213 = vld [vmem:[#allocation6 + $0x488] sm:$0xff]
    %v1214 = vld [vmem:[#allocation6 + $0x490] sm:$0xff]
    %v1215 = vld [vmem:[#allocation6 + $0x498] sm:$0xff]
    %v1216 = vld [vmem:[#allocation6 + $0x4a0] sm:$0xff]
    %v1217 = vld [vmem:[#allocation6 + $0x4a8] sm:$0xff]
    %v1218 = vld [vmem:[#allocation6 + $0x4b0] sm:$0xff]
    %v1219 = vld [vmem:[#allocation6 + $0x4b8] sm:$0xff]
    %v1220 = vld [vmem:[#allocation6 + $0x4c0] sm:$0xff]
    %v1221 = vld [vmem:[#allocation6 + $0x4c8] sm:$0xff]
    %v1222 = vld [vmem:[#allocation6 + $0x4d0] sm:$0xff]
    %v1223 = vld [vmem:[#allocation6 + $0x4d8] sm:$0xff]
    %v1224 = vld [vmem:[#allocation6 + $0x4e0] sm:$0xff]
    %v1225 = vld [vmem:[#allocation6 + $0x4e8] sm:$0xff]
    %v1226 = vld [vmem:[#allocation6 + $0x4f0] sm:$0xff]
    %v1227 = vld [vmem:[#allocation6 + $0x4f8] sm:$0xff]
    %v1228 = vld [vmem:[#allocation6 + $0x500] sm:$0xff]
    %v1229 = vld [vmem:[#allocation6 + $0x508] sm:$0xff]
    %v1230 = vld [vmem:[#allocation6 + $0x510] sm:$0xff]
    %v1231 = vld [vmem:[#allocation6 + $0x518] sm:$0xff]
    %v1232 = vld [vmem:[#allocation6 + $0x520] sm:$0xff]
    %v1233 = vld [vmem:[#allocation6 + $0x528] sm:$0xff]
    %v1234 = vld [vmem:[#allocation6 + $0x530] sm:$0xff]
    %v1235 = vld [vmem:[#allocation6 + $0x538] sm:$0xff]
    %v1236 = vld [vmem:[#allocation6 + $0x540] sm:$0xff]
    %v1237 = vld [vmem:[#allocation6 + $0x548] sm:$0xff]
    %v1238 = vld [vmem:[#allocation6 + $0x550] sm:$0xff]
    %v1239 = vld [vmem:[#allocation6 + $0x558] sm:$0xff]
    %v1240 = vld [vmem:[#allocation6 + $0x560] sm:$0xff]
    %v1241 = vld [vmem:[#allocation6 + $0x568] sm:$0xff]
    %v1242 = vld [vmem:[#allocation6 + $0x570] sm:$0xff]
    %v1243 = vld [vmem:[#allocation6 + $0x578] sm:$0xff]
    %v1244 = vld [vmem:[#allocation6 + $0x580] sm:$0xff]
    %v1245 = vld [vmem:[#allocation6 + $0x588] sm:$0xff]
    %v1246 = vld [vmem:[#allocation6 + $0x590] sm:$0xff]
    %v1247 = vld [vmem:[#allocation6 + $0x598] sm:$0xff]
    %v1248 = vld [vmem:[#allocation6 + $0x5a0] sm:$0xff]
    %v1249 = vld [vmem:[#allocation6 + $0x5a8] sm:$0xff]
    %v1250 = vld [vmem:[#allocation6 + $0x5b0] sm:$0xff]
    %v1251 = vld [vmem:[#allocation6 + $0x5b8] sm:$0xff]
    %v1252 = vld [vmem:[#allocation6 + $0x5c0] sm:$0xff]
    %v1253 = vld [vmem:[#allocation6 + $0x5c8] sm:$0xff]
    %v1254 = vld [vmem:[#allocation6 + $0x5d0] sm:$0xff]
    %v1255 = vld [vmem:[#allocation6 + $0x5d8] sm:$0xff]
    %v1256 = vld [vmem:[#allocation6 + $0x5e0] sm:$0xff]
    %v1257 = vld [vmem:[#allocation6 + $0x5e8] sm:$0xff]
    %v1258 = vld [vmem:[#allocation6 + $0x5f0] sm:$0xff]
    %v1259 = vld [vmem:[#allocation6 + $0x5f8] sm:$0xff]
    %s1260 = scalar_lea.vmem %s4, 1
    %v1261 = vld [vmem:[%s1260] ss:$4 sm:$0x3]
    %v1262 = vld [vmem:[#allocation2] sm:$0xff]
    %v1263 = vld [vmem:[#allocation2 + $0x8] sm:$0xff]
    %v1264 = vld [vmem:[#allocation2 + $0x10] sm:$0xff]
    %v1265 = vld [vmem:[#allocation2 + $0x18] sm:$0xff]
    %v1266 = vld [vmem:[#allocation2 + $0x30] sm:$0xff]
    %v1267 = vld [vmem:[#allocation2 + $0x38] sm:$0xff]
    %v1268 = vld [vmem:[#allocation2 + $0x40] sm:$0xff]
    %v1269 = vld [vmem:[#allocation2 + $0x48] sm:$0xff]
    %v1270 = vld [vmem:[#allocation2] sm:$0xfe]
    %v1271 = vld [vmem:[#allocation2 + $0x8] sm:$0xfe]
    %v1272 = vld [vmem:[#allocation2 + $0x20] sm:$0x1]
    %v1273 = vld [vmem:[#allocation2 + $0x28] sm:$0x1]
    %v1274 = vld [vmem:[#allocation2 + $0x30] sm:$0xfe]
    %v1275 = vld [vmem:[#allocation2 + $0x38] sm:$0xfe]
    %v1276 = vld [vmem:[#allocation2 + $0x50] sm:$0x1]
    %v1277 = vld [vmem:[#allocation2 + $0x58] sm:$0x1]
    %v1290 = vrot.slane %v1270, 1
    %v1291 = vrot.slane %v1264, 1
    %v1292 = vsel %vm179, %v1290, %v1291
    %v1293 = vrot.slane %v1271, 1
    %v1294 = vrot.slane %v1265, 1
    %v1295 = vsel %vm179, %v1293, %v1294
    %v1296 = vrot.slane %v1272, 1
    %v1297 = vsel %vm179, %v1291, %v1296
    %v1298 = vrot.slane %v1273, 1
    %v1299 = vsel %vm179, %v1294, %v1298
    %v1300 = vrot.slane %v1274, 1
    %v1301 = vrot.slane %v1268, 1
    %v1302 = vsel %vm179, %v1300, %v1301
    %v1303 = vrot.slane %v1275, 1
    %v1304 = vrot.slane %v1269, 1
    %v1305 = vsel %vm179, %v1303, %v1304
    %v1306 = vrot.slane %v1276, 1
    %v1307 = vsel %vm179, %v1301, %v1306
    %v1308 = vrot.slane %v1277, 1
    %v1309 = vsel %vm179, %v1304, %v1308
    %1318 = vmatprep.subr.mxu0 %v1133
    %1319 = vmatpush1.msra.mxu0 %v1132
    %1320 = vmatprep.subr.mxu0 %v1135
    %1321 = vmatpush1.msra.mxu0 %v1134
    %1322 = vmatprep.subr.mxu0 %v1137
    %1323 = vmatpush1.msra.mxu0 %v1136
    %1324 = vmatprep.subr.mxu0 %v1139
    %1325 = vmatpush1.msra.mxu0 %v1138
    %1326 = vmatprep.subr.mxu0 %v1141
    %1327 = vmatpush1.msra.mxu0 %v1140
    %1328 = vmatprep.subr.mxu0 %v1143
    %1329 = vmatpush1.msra.mxu0 %v1142
    %1330 = vmatprep.subr.mxu0 %v1145
    %1331 = vmatpush1.msra.mxu0 %v1144
    %1332 = vmatprep.subr.mxu0 %v1147
    %1333 = vmatpush1.msra.mxu0 %v1146
    %1334 = vmatprep.subr.mxu0 %v1149
    %1335 = vmatpush1.msra.mxu0 %v1148
    %1336 = vmatprep.subr.mxu0 %v1151
    %1337 = vmatpush1.msra.mxu0 %v1150
    %1338 = vmatprep.subr.mxu0 %v1153
    %1339 = vmatpush1.msra.mxu0 %v1152
    %1340 = vmatprep.subr.mxu0 %v1155
    %1341 = vmatpush1.msra.mxu0 %v1154
    %1342 = vmatprep.subr.mxu0 %v1157
    %1343 = vmatpush1.msra.mxu0 %v1156
    %1344 = vmatprep.subr.mxu0 %v1159
    %1345 = vmatpush1.msra.mxu0 %v1158
    %1346 = vmatprep.subr.mxu0 %v1161
    %1347 = vmatpush1.msra.mxu0 %v1160
    %1348 = vmatprep.subr.mxu0 %v1163
    %1349 = vmatpush1.msra.mxu0 %v1162
    %1350 = vmatprep.subr.mxu0 %v1165
    %1351 = vmatpush1.msra.mxu0 %v1164
    %1352 = vmatprep.subr.mxu0 %v1167
    %1353 = vmatpush1.msra.mxu0 %v1166
    %1354 = vmatprep.subr.mxu0 %v1169
    %1355 = vmatpush1.msra.mxu0 %v1168
    %1356 = vmatprep.subr.mxu0 %v1171
    %1357 = vmatpush1.msra.mxu0 %v1170
    %1358 = vmatprep.subr.mxu0 %v1173
    %1359 = vmatpush1.msra.mxu0 %v1172
    %1360 = vmatprep.subr.mxu0 %v1175
    %1361 = vmatpush1.msra.mxu0 %v1174
    %1362 = vmatprep.subr.mxu0 %v1177
    %1363 = vmatpush1.msra.mxu0 %v1176
    %1364 = vmatprep.subr.mxu0 %v1179
    %1365 = vmatpush1.msra.mxu0 %v1178
    %1366 = vmatprep.subr.mxu0 %v1181
    %1367 = vmatpush1.msra.mxu0 %v1180
    %1368 = vmatprep.subr.mxu0 %v1183
    %1369 = vmatpush1.msra.mxu0 %v1182
    %1370 = vmatprep.subr.mxu0 %v1185
    %1371 = vmatpush1.msra.mxu0 %v1184
    %1372 = vmatprep.subr.mxu0 %v1187
    %1373 = vmatpush1.msra.mxu0 %v1186
    %1374 = vmatprep.subr.mxu0 %v1189
    %1375 = vmatpush1.msra.mxu0 %v1188
    %1376 = vmatprep.subr.mxu0 %v1191
    %1377 = vmatpush1.msra.mxu0 %v1190
    %1378 = vmatprep.subr.mxu0 %v1193
    %1379 = vmatpush1.msra.mxu0 %v1192
    %1380 = vmatprep.subr.mxu0 %v1195
    %1381 = vmatpush1.msra.mxu0 %v1194
    %1382 = vmatprep.mubr.f32.mxu0 %v1295
    %1383 = vmatmul.mubr.f32.gmra.mrb[0].mxu0 %v1292
    %v1384 = vpop.f32.mrb[0].mxu0
    %v1385 = vadd.f32 0.0, %v1384
    %v1386 = vpop.f32.mrb[0].mxu0
    %v1387 = vadd.f32 0.0, %v1386
    %1388 = vmatprep.mubr.f32.mxu0 %v1299
    %1389 = vmatmul.mubr.f32.gmra.mrb[0].mxu0 %v1297
    %v1390 = vpop.f32.mrb[0].mxu0
    %v1391 = vadd.f32 0.0, %v1390
    %v1392 = vpop.f32.mrb[0].mxu0
    %v1393 = vadd.f32 0.0, %v1392
    %1394 = vmatprep.mubr.f32.mxu0 %v1305
    %1395 = vmatmul.mubr.f32.gmra.mrb[0].mxu0 %v1302
    %v1396 = vpop.f32.mrb[0].mxu0
    %v1397 = vadd.f32 0.0, %v1396
    %v1398 = vpop.f32.mrb[0].mxu0
    %v1399 = vadd.f32 0.0, %v1398
    %1400 = vmatprep.mubr.f32.mxu0 %v1309
    %1401 = vmatmul.mubr.f32.gmra.mrb[0].mxu0 %v1307
    %v1402 = vpop.f32.mrb[0].mxu0
    %v1403 = vadd.f32 0.0, %v1402
    %v1404 = vpop.f32.mrb[0].mxu0
    %v1405 = vadd.f32 0.0, %v1404
    %1406 = vdwg.mxu0
    %1407 = vmatprep.subr.mxu0 %v1069
    %1408 = vmatpush1.msra.mxu0 %v1068
    %1409 = vmatprep.subr.mxu0 %v1071
    %1410 = vmatpush1.msra.mxu0 %v1070
    %1411 = vmatprep.subr.mxu0 %v1073
    %1412 = vmatpush1.msra.mxu0 %v1072
    %1413 = vmatprep.subr.mxu0 %v1075
    %1414 = vmatpush1.msra.mxu0 %v1074
    %1415 = vmatprep.subr.mxu0 %v1077
    %1416 = vmatpush1.msra.mxu0 %v1076
    %1417 = vmatprep.subr.mxu0 %v1079
    %1418 = vmatpush1.msra.mxu0 %v1078
    %1419 = vmatprep.subr.mxu0 %v1081
    %1420 = vmatpush1.msra.mxu0 %v1080
    %1421 = vmatprep.subr.mxu0 %v1083
    %1422 = vmatpush1.msra.mxu0 %v1082
    %1423 = vmatprep.subr.mxu0 %v1085
    %1424 = vmatpush1.msra.mxu0 %v1084
    %1425 = vmatprep.subr.mxu0 %v1087
    %1426 = vmatpush1.msra.mxu0 %v1086
    %1427 = vmatprep.subr.mxu0 %v1089
    %1428 = vmatpush1.msra.mxu0 %v1088
    %1429 = vmatprep.subr.mxu0 %v1091
    %1430 = vmatpush1.msra.mxu0 %v1090
    %1431 = vmatprep.subr.mxu0 %v1093
    %1432 = vmatpush1.msra.mxu0 %v1092
    %1433 = vmatprep.subr.mxu0 %v1095
    %1434 = vmatpush1.msra.mxu0 %v1094
    %1435 = vmatprep.subr.mxu0 %v1097
    %1436 = vmatpush1.msra.mxu0 %v1096
    %1437 = vmatprep.subr.mxu0 %v1099
    %1438 = vmatpush1.msra.mxu0 %v1098
    %1439 = vmatprep.subr.mxu0 %v1101
    %1440 = vmatpush1.msra.mxu0 %v1100
    %1441 = vmatprep.subr.mxu0 %v1103
    %1442 = vmatpush1.msra.mxu0 %v1102
    %1443 = vmatprep.subr.mxu0 %v1105
    %1444 = vmatpush1.msra.mxu0 %v1104
    %1445 = vmatprep.subr.mxu0 %v1107
    %1446 = vmatpush1.msra.mxu0 %v1106
    %1447 = vmatprep.subr.mxu0 %v1109
    %1448 = vmatpush1.msra.mxu0 %v1108
    %1449 = vmatprep.subr.mxu0 %v1111
    %1450 = vmatpush1.msra.mxu0 %v1110
    %1451 = vmatprep.subr.mxu0 %v1113
    %1452 = vmatpush1.msra.mxu0 %v1112
    %1453 = vmatprep.subr.mxu0 %v1115
    %1454 = vmatpush1.msra.mxu0 %v1114
    %1455 = vmatprep.subr.mxu0 %v1117
    %1456 = vmatpush1.msra.mxu0 %v1116
    %1457 = vmatprep.subr.mxu0 %v1119
    %1458 = vmatpush1.msra.mxu0 %v1118
    %1459 = vmatprep.subr.mxu0 %v1121
    %1460 = vmatpush1.msra.mxu0 %v1120
    %1461 = vmatprep.subr.mxu0 %v1123
    %1462 = vmatpush1.msra.mxu0 %v1122
    %1463 = vmatprep.subr.mxu0 %v1125
    %1464 = vmatpush1.msra.mxu0 %v1124
    %1465 = vmatprep.subr.mxu0 %v1127
    %1466 = vmatpush1.msra.mxu0 %v1126
    %1467 = vmatprep.subr.mxu0 %v1129
    %1468 = vmatpush1.msra.mxu0 %v1128
    %1469 = vmatprep.subr.mxu0 %v1131
    %1470 = vmatpush1.msra.mxu0 %v1130
    %1471 = vmatprep.mubr.f32.mxu0 %v1263
    %1472 = vmatmul.mubr.f32.gmra.mrb[0].mxu0 %v1262
    %v1473 = vpop.f32.mrb[0].mxu0
    %v1474 = vadd.f32 %v1385, %v1473
    %v1475 = vpop.f32.mrb[0].mxu0
    %v1476 = vadd.f32 %v1387, %v1475
    %1477 = vmatprep.mubr.f32.mxu0 %v1265
    %1478 = vmatmul.mubr.f32.gmra.mrb[0].mxu0 %v1264
    %v1479 = vpop.f32.mrb[0].mxu0
    %v1480 = vadd.f32 %v1391, %v1479
    %v1481 = vpop.f32.mrb[0].mxu0
    %v1482 = vadd.f32 %v1393, %v1481
    %1483 = vmatprep.mubr.f32.mxu0 %v1267
    %1484 = vmatmul.mubr.f32.gmra.mrb[0].mxu0 %v1266
    %v1485 = vpop.f32.mrb[0].mxu0
    %v1486 = vadd.f32 %v1397, %v1485
    %v1487 = vpop.f32.mrb[0].mxu0
    %v1488 = vadd.f32 %v1399, %v1487
    %1489 = vmatprep.mubr.f32.mxu0 %v1269
    %1490 = vmatmul.mubr.f32.gmra.mrb[0].mxu0 %v1268
    %v1491 = vpop.f32.mrb[0].mxu0
    %v1492 = vadd.f32 %v1403, %v1491
    %v1493 = vpop.f32.mrb[0].mxu0
    %v1494 = vadd.f32 %v1405, %v1493
    %1495 = vdwg.mxu0
    %v1496 = vld [vmem:[#allocation2] sm:$0xfc]
    %v1497 = vld [vmem:[#allocation2 + $0x8] sm:$0xfc]
    %v1498 = vld [vmem:[#allocation2 + $0x20] sm:$0x3]
    %v1499 = vld [vmem:[#allocation2 + $0x28] sm:$0x3]
    %v1500 = vld [vmem:[#allocation2 + $0x30] sm:$0xfc]
    %v1501 = vld [vmem:[#allocation2 + $0x38] sm:$0xfc]
    %v1502 = vld [vmem:[#allocation2 + $0x50] sm:$0x3]
    %v1503 = vld [vmem:[#allocation2 + $0x58] sm:$0x3]
    %v1512 = vrot.slane %v1496, 2
    %v1513 = vrot.slane %v1264, 2
    %v1514 = vsel %vm394, %v1512, %v1513
    %v1515 = vrot.slane %v1497, 2
    %v1516 = vrot.slane %v1265, 2
    %v1517 = vsel %vm394, %v1515, %v1516
    %v1518 = vrot.slane %v1498, 2
    %v1519 = vsel %vm394, %v1513, %v1518
    %v1520 = vrot.slane %v1499, 2
    %v1521 = vsel %vm394, %v1516, %v1520
    %v1522 = vrot.slane %v1500, 2
    %v1523 = vrot.slane %v1268, 2
    %v1524 = vsel %vm394, %v1522, %v1523
    %v1525 = vrot.slane %v1501, 2
    %v1526 = vrot.slane %v1269, 2
    %v1527 = vsel %vm394, %v1525, %v1526
    %v1528 = vrot.slane %v1502, 2
    %v1529 = vsel %vm394, %v1523, %v1528
    %v1530 = vrot.slane %v1503, 2
    %v1531 = vsel %vm394, %v1526, %v1530
    %1540 = vmatprep.subr.mxu0 %v1197
    %1541 = vmatpush1.msra.mxu0 %v1196
    %1542 = vmatprep.subr.mxu0 %v1199
    %1543 = vmatpush1.msra.mxu0 %v1198
    %1544 = vmatprep.subr.mxu0 %v1201
    %1545 = vmatpush1.msra.mxu0 %v1200
    %1546 = vmatprep.subr.mxu0 %v1203
    %1547 = vmatpush1.msra.mxu0 %v1202
    %1548 = vmatprep.subr.mxu0 %v1205
    %1549 = vmatpush1.msra.mxu0 %v1204
    %1550 = vmatprep.subr.mxu0 %v1207
    %1551 = vmatpush1.msra.mxu0 %v1206
    %1552 = vmatprep.subr.mxu0 %v1209
    %1553 = vmatpush1.msra.mxu0 %v1208
    %1554 = vmatprep.subr.mxu0 %v1211
    %1555 = vmatpush1.msra.mxu0 %v1210
    %1556 = vmatprep.subr.mxu0 %v1213
    %1557 = vmatpush1.msra.mxu0 %v1212
    %1558 = vmatprep.subr.mxu0 %v1215
    %1559 = vmatpush1.msra.mxu0 %v1214
    %1560 = vmatprep.subr.mxu0 %v1217
    %1561 = vmatpush1.msra.mxu0 %v1216
    %1562 = vmatprep.subr.mxu0 %v1219
    %1563 = vmatpush1.msra.mxu0 %v1218
    %1564 = vmatprep.subr.mxu0 %v1221
    %1565 = vmatpush1.msra.mxu0 %v1220
    %1566 = vmatprep.subr.mxu0 %v1223
    %1567 = vmatpush1.msra.mxu0 %v1222
    %1568 = vmatprep.subr.mxu0 %v1225
    %1569 = vmatpush1.msra.mxu0 %v1224
    %1570 = vmatprep.subr.mxu0 %v1227
    %1571 = vmatpush1.msra.mxu0 %v1226
    %1572 = vmatprep.subr.mxu0 %v1229
    %1573 = vmatpush1.msra.mxu0 %v1228
    %1574 = vmatprep.subr.mxu0 %v1231
    %1575 = vmatpush1.msra.mxu0 %v1230
    %1576 = vmatprep.subr.mxu0 %v1233
    %1577 = vmatpush1.msra.mxu0 %v1232
    %1578 = vmatprep.subr.mxu0 %v1235
    %1579 = vmatpush1.msra.mxu0 %v1234
    %1580 = vmatprep.subr.mxu0 %v1237
    %1581 = vmatpush1.msra.mxu0 %v1236
    %1582 = vmatprep.subr.mxu0 %v1239
    %1583 = vmatpush1.msra.mxu0 %v1238
    %1584 = vmatprep.subr.mxu0 %v1241
    %1585 = vmatpush1.msra.mxu0 %v1240
    %1586 = vmatprep.subr.mxu0 %v1243
    %1587 = vmatpush1.msra.mxu0 %v1242
    %1588 = vmatprep.subr.mxu0 %v1245
    %1589 = vmatpush1.msra.mxu0 %v1244
    %1590 = vmatprep.subr.mxu0 %v1247
    %1591 = vmatpush1.msra.mxu0 %v1246
    %1592 = vmatprep.subr.mxu0 %v1249
    %1593 = vmatpush1.msra.mxu0 %v1248
    %1594 = vmatprep.subr.mxu0 %v1251
    %1595 = vmatpush1.msra.mxu0 %v1250
    %1596 = vmatprep.subr.mxu0 %v1253
    %1597 = vmatpush1.msra.mxu0 %v1252
    %1598 = vmatprep.subr.mxu0 %v1255
    %1599 = vmatpush1.msra.mxu0 %v1254
    %1600 = vmatprep.subr.mxu0 %v1257
    %1601 = vmatpush1.msra.mxu0 %v1256
    %1602 = vmatprep.subr.mxu0 %v1259
    %1603 = vmatpush1.msra.mxu0 %v1258
    %1604 = vmatprep.mubr.f32.mxu0 %v1517
    %1605 = vmatmul.mubr.f32.gmra.mrb[0].mxu0 %v1514
    %v1606 = vpop.f32.mrb[0].mxu0
    %v1607 = vadd.f32 0.0, %v1606
    %v1608 = vpop.f32.mrb[0].mxu0
    %v1609 = vadd.f32 0.0, %v1608
    %1610 = vmatprep.mubr.f32.mxu0 %v1521
    %1611 = vmatmul.mubr.f32.gmra.mrb[0].mxu0 %v1519
    %v1612 = vpop.f32.mrb[0].mxu0
    %v1613 = vadd.f32 0.0, %v1612
    %v1614 = vpop.f32.mrb[0].mxu0
    %v1615 = vadd.f32 0.0, %v1614
    %1616 = vmatprep.mubr.f32.mxu0 %v1527
    %1617 = vmatmul.mubr.f32.gmra.mrb[0].mxu0 %v1524
    %v1618 = vpop.f32.mrb[0].mxu0
    %v1619 = vadd.f32 0.0, %v1618
    %v1620 = vpop.f32.mrb[0].mxu0
    %v1621 = vadd.f32 0.0, %v1620
    %1622 = vmatprep.mubr.f32.mxu0 %v1531
    %1623 = vmatmul.mubr.f32.gmra.mrb[0].mxu0 %v1529
    %v1624 = vpop.f32.mrb[0].mxu0
    %v1625 = vadd.f32 0.0, %v1624
    %v1626 = vpop.f32.mrb[0].mxu0
    %v1627 = vadd.f32 0.0, %v1626
    %1628 = vdwg.mxu0
    %v1629 = vadd.f32 %v1474, %v1607
    %v1630 = vadd.f32 %v1476, %v1609
    %v1631 = vadd.f32 %v1480, %v1613
    %v1632 = vadd.f32 %v1482, %v1615
    %v1633 = vadd.f32 %v1486, %v1619
    %v1634 = vadd.f32 %v1488, %v1621
    %v1635 = vadd.f32 %v1492, %v1625
    %v1636 = vadd.f32 %v1494, %v1627
    %v1638 = vlaneseq
    %v1639 = vshrl.u32 %v1638, 7
    %v1640 = vsub.s32 0, %v1639
    %v1641 = vrot.slane %v1261, %v1640
    %v1642 = vlaneseq
    %v1643 = vshrl.u32 %v1642, 7
    %v1644 = vsub.s32 1, %v1643
    %v1645 = vrot.slane %v1261, %v1644
    %v1648 = vadd.f32 %v1629, %v1641
    %v1649 = vadd.f32 %v1630, %v1645
    %v1650 = vadd.f32 %v1631, %v1641
    %v1651 = vadd.f32 %v1632, %v1645
    %v1652 = vadd.f32 %v1633, %v1641
    %v1653 = vadd.f32 %v1634, %v1645
    %v1654 = vadd.f32 %v1635, %v1641
    %v1655 = vadd.f32 %v1636, %v1645
    %vm1656 = vcmp.gt.f32.partialorder %v1648, 0.0
    %vm1657 = vcmp.gt.f32.partialorder %v1649, 0.0
    %vm1658 = vcmp.gt.f32.partialorder %v1650, 0.0
    %vm1659 = vcmp.gt.f32.partialorder %v1651, 0.0
    %vm1660 = vcmp.gt.f32.partialorder %v1652, 0.0
    %vm1661 = vcmp.gt.f32.partialorder %v1653, 0.0
    %vm1662 = vcmp.gt.f32.partialorder %v1654, 0.0
    %vm1663 = vcmp.gt.f32.partialorder %v1655, 0.0
    %v1664 = vmul.f32 %v1648, 0.01
    %v1665 = vmul.f32 %v1649, 0.01
    %v1666 = vmul.f32 %v1650, 0.01
    %v1667 = vmul.f32 %v1651, 0.01
    %v1668 = vmul.f32 %v1652, 0.01
    %v1669 = vmul.f32 %v1653, 0.01
    %v1670 = vmul.f32 %v1654, 0.01
    %v1671 = vmul.f32 %v1655, 0.01
    %v1672 = vsel %vm1656, %v1648, %v1664
    %v1673 = vsel %vm1657, %v1649, %v1665
    %v1674 = vsel %vm1658, %v1650, %v1666
    %v1675 = vsel %vm1659, %v1651, %v1667
    %v1676 = vsel %vm1660, %v1652, %v1668
    %v1677 = vsel %vm1661, %v1653, %v1669
    %v1678 = vsel %vm1662, %v1654, %v1670
    %v1679 = vsel %vm1663, %v1655, %v1671
    %v1688 = vrot.slane %v1672, 7
    %v1689 = vrot.slane %v1673, 7
    %v1690 = vrot.slane %v1674, 7
    %v1691 = vsel %vm94, %v1688, %v1690
    %v1692 = vrot.slane %v1675, 7
    %v1693 = vsel %vm94, %v1689, %v1692
    %v1694 = vrot.slane %v1676, 7
    %v1695 = vrot.slane %v1677, 7
    %v1696 = vrot.slane %v1678, 7
    %v1697 = vsel %vm94, %v1694, %v1696
    %v1698 = vrot.slane %v1679, 7
    %v1699 = vsel %vm94, %v1695, %v1698
    %1712 = vst [vmem:[#allocation2] sm:$0xfe] %v1688
    %1713 = vst [vmem:[#allocation2 + $0x8] sm:$0xfe] %v1689
    %1714 = vst [vmem:[#allocation2 + $0x10] sm:$0xff] %v1691
    %1715 = vst [vmem:[#allocation2 + $0x18] sm:$0xff] %v1693
    %1716 = vst [vmem:[#allocation2 + $0x20] sm:$0x1] %v1690
    %1717 = vst [vmem:[#allocation2 + $0x28] sm:$0x1] %v1692
    %1718 = vst [vmem:[#allocation2 + $0x30] sm:$0xfe] %v1694
    %1719 = vst [vmem:[#allocation2 + $0x38] sm:$0xfe] %v1695
    %1720 = vst [vmem:[#allocation2 + $0x40] sm:$0xff] %v1697
    %1721 = vst [vmem:[#allocation2 + $0x48] sm:$0xff] %v1699
    %1722 = vst [vmem:[#allocation2 + $0x50] sm:$0x1] %v1696
    %1723 = vst [vmem:[#allocation2 + $0x58] sm:$0x1] %v1698
    %v1724 = vld [vmem:[#allocation8] sm:$0xff]
    %v1725 = vld [vmem:[#allocation8 + $0x8] sm:$0xff]
    %v1726 = vld [vmem:[#allocation8 + $0x10] sm:$0xff]
    %v1727 = vld [vmem:[#allocation8 + $0x18] sm:$0xff]
    %v1728 = vld [vmem:[#allocation8 + $0x20] sm:$0xff]
    %v1729 = vld [vmem:[#allocation8 + $0x28] sm:$0xff]
    %v1730 = vld [vmem:[#allocation8 + $0x30] sm:$0xff]
    %v1731 = vld [vmem:[#allocation8 + $0x38] sm:$0xff]
    %v1732 = vld [vmem:[#allocation8 + $0x40] sm:$0xff]
    %v1733 = vld [vmem:[#allocation8 + $0x48] sm:$0xff]
    %v1734 = vld [vmem:[#allocation8 + $0x50] sm:$0xff]
    %v1735 = vld [vmem:[#allocation8 + $0x58] sm:$0xff]
    %v1736 = vld [vmem:[#allocation8 + $0x60] sm:$0xff]
    %v1737 = vld [vmem:[#allocation8 + $0x68] sm:$0xff]
    %v1738 = vld [vmem:[#allocation8 + $0x70] sm:$0xff]
    %v1739 = vld [vmem:[#allocation8 + $0x78] sm:$0xff]
    %v1740 = vld [vmem:[#allocation8 + $0x80] sm:$0xff]
    %v1741 = vld [vmem:[#allocation8 + $0x88] sm:$0xff]
    %v1742 = vld [vmem:[#allocation8 + $0x90] sm:$0xff]
    %v1743 = vld [vmem:[#allocation8 + $0x98] sm:$0xff]
    %v1744 = vld [vmem:[#allocation8 + $0xa0] sm:$0xff]
    %v1745 = vld [vmem:[#allocation8 + $0xa8] sm:$0xff]
    %v1746 = vld [vmem:[#allocation8 + $0xb0] sm:$0xff]
    %v1747 = vld [vmem:[#allocation8 + $0xb8] sm:$0xff]
    %v1748 = vld [vmem:[#allocation8 + $0xc0] sm:$0xff]
    %v1749 = vld [vmem:[#allocation8 + $0xc8] sm:$0xff]
    %v1750 = vld [vmem:[#allocation8 + $0xd0] sm:$0xff]
    %v1751 = vld [vmem:[#allocation8 + $0xd8] sm:$0xff]
    %v1752 = vld [vmem:[#allocation8 + $0xe0] sm:$0xff]
    %v1753 = vld [vmem:[#allocation8 + $0xe8] sm:$0xff]
    %v1754 = vld [vmem:[#allocation8 + $0xf0] sm:$0xff]
    %v1755 = vld [vmem:[#allocation8 + $0xf8] sm:$0xff]
    %v1756 = vld [vmem:[#allocation8 + $0x100] sm:$0xff]
    %v1757 = vld [vmem:[#allocation8 + $0x108] sm:$0xff]
    %v1758 = vld [vmem:[#allocation8 + $0x110] sm:$0xff]
    %v1759 = vld [vmem:[#allocation8 + $0x118] sm:$0xff]
    %v1760 = vld [vmem:[#allocation8 + $0x120] sm:$0xff]
    %v1761 = vld [vmem:[#allocation8 + $0x128] sm:$0xff]
    %v1762 = vld [vmem:[#allocation8 + $0x130] sm:$0xff]
    %v1763 = vld [vmem:[#allocation8 + $0x138] sm:$0xff]
    %v1764 = vld [vmem:[#allocation8 + $0x140] sm:$0xff]
    %v1765 = vld [vmem:[#allocation8 + $0x148] sm:$0xff]
    %v1766 = vld [vmem:[#allocation8 + $0x150] sm:$0xff]
    %v1767 = vld [vmem:[#allocation8 + $0x158] sm:$0xff]
    %v1768 = vld [vmem:[#allocation8 + $0x160] sm:$0xff]
    %v1769 = vld [vmem:[#allocation8 + $0x168] sm:$0xff]
    %v1770 = vld [vmem:[#allocation8 + $0x170] sm:$0xff]
    %v1771 = vld [vmem:[#allocation8 + $0x178] sm:$0xff]
    %v1772 = vld [vmem:[#allocation8 + $0x180] sm:$0xff]
    %v1773 = vld [vmem:[#allocation8 + $0x188] sm:$0xff]
    %v1774 = vld [vmem:[#allocation8 + $0x190] sm:$0xff]
    %v1775 = vld [vmem:[#allocation8 + $0x198] sm:$0xff]
    %v1776 = vld [vmem:[#allocation8 + $0x1a0] sm:$0xff]
    %v1777 = vld [vmem:[#allocation8 + $0x1a8] sm:$0xff]
    %v1778 = vld [vmem:[#allocation8 + $0x1b0] sm:$0xff]
    %v1779 = vld [vmem:[#allocation8 + $0x1b8] sm:$0xff]
    %v1780 = vld [vmem:[#allocation8 + $0x1c0] sm:$0xff]
    %v1781 = vld [vmem:[#allocation8 + $0x1c8] sm:$0xff]
    %v1782 = vld [vmem:[#allocation8 + $0x1d0] sm:$0xff]
    %v1783 = vld [vmem:[#allocation8 + $0x1d8] sm:$0xff]
    %v1784 = vld [vmem:[#allocation8 + $0x1e0] sm:$0xff]
    %v1785 = vld [vmem:[#allocation8 + $0x1e8] sm:$0xff]
    %v1786 = vld [vmem:[#allocation8 + $0x1f0] sm:$0xff]
    %v1787 = vld [vmem:[#allocation8 + $0x1f8] sm:$0xff]
    %v1788 = vld [vmem:[#allocation8 + $0x200] sm:$0xff]
    %v1789 = vld [vmem:[#allocation8 + $0x208] sm:$0xff]
    %v1790 = vld [vmem:[#allocation8 + $0x210] sm:$0xff]
    %v1791 = vld [vmem:[#allocation8 + $0x218] sm:$0xff]
    %v1792 = vld [vmem:[#allocation8 + $0x220] sm:$0xff]
    %v1793 = vld [vmem:[#allocation8 + $0x228] sm:$0xff]
    %v1794 = vld [vmem:[#allocation8 + $0x230] sm:$0xff]
    %v1795 = vld [vmem:[#allocation8 + $0x238] sm:$0xff]
    %v1796 = vld [vmem:[#allocation8 + $0x240] sm:$0xff]
    %v1797 = vld [vmem:[#allocation8 + $0x248] sm:$0xff]
    %v1798 = vld [vmem:[#allocation8 + $0x250] sm:$0xff]
    %v1799 = vld [vmem:[#allocation8 + $0x258] sm:$0xff]
    %v1800 = vld [vmem:[#allocation8 + $0x260] sm:$0xff]
    %v1801 = vld [vmem:[#allocation8 + $0x268] sm:$0xff]
    %v1802 = vld [vmem:[#allocation8 + $0x270] sm:$0xff]
    %v1803 = vld [vmem:[#allocation8 + $0x278] sm:$0xff]
    %v1804 = vld [vmem:[#allocation8 + $0x280] sm:$0xff]
    %v1805 = vld [vmem:[#allocation8 + $0x288] sm:$0xff]
    %v1806 = vld [vmem:[#allocation8 + $0x290] sm:$0xff]
    %v1807 = vld [vmem:[#allocation8 + $0x298] sm:$0xff]
    %v1808 = vld [vmem:[#allocation8 + $0x2a0] sm:$0xff]
    %v1809 = vld [vmem:[#allocation8 + $0x2a8] sm:$0xff]
    %v1810 = vld [vmem:[#allocation8 + $0x2b0] sm:$0xff]
    %v1811 = vld [vmem:[#allocation8 + $0x2b8] sm:$0xff]
    %v1812 = vld [vmem:[#allocation8 + $0x2c0] sm:$0xff]
    %v1813 = vld [vmem:[#allocation8 + $0x2c8] sm:$0xff]
    %v1814 = vld [vmem:[#allocation8 + $0x2d0] sm:$0xff]
    %v1815 = vld [vmem:[#allocation8 + $0x2d8] sm:$0xff]
    %v1816 = vld [vmem:[#allocation8 + $0x2e0] sm:$0xff]
    %v1817 = vld [vmem:[#allocation8 + $0x2e8] sm:$0xff]
    %v1818 = vld [vmem:[#allocation8 + $0x2f0] sm:$0xff]
    %v1819 = vld [vmem:[#allocation8 + $0x2f8] sm:$0xff]
    %v1820 = vld [vmem:[#allocation8 + $0x300] sm:$0xff]
    %v1821 = vld [vmem:[#allocation8 + $0x308] sm:$0xff]
    %v1822 = vld [vmem:[#allocation8 + $0x310] sm:$0xff]
    %v1823 = vld [vmem:[#allocation8 + $0x318] sm:$0xff]
    %v1824 = vld [vmem:[#allocation8 + $0x320] sm:$0xff]
    %v1825 = vld [vmem:[#allocation8 + $0x328] sm:$0xff]
    %v1826 = vld [vmem:[#allocation8 + $0x330] sm:$0xff]
    %v1827 = vld [vmem:[#allocation8 + $0x338] sm:$0xff]
    %v1828 = vld [vmem:[#allocation8 + $0x340] sm:$0xff]
    %v1829 = vld [vmem:[#allocation8 + $0x348] sm:$0xff]
    %v1830 = vld [vmem:[#allocation8 + $0x350] sm:$0xff]
    %v1831 = vld [vmem:[#allocation8 + $0x358] sm:$0xff]
    %v1832 = vld [vmem:[#allocation8 + $0x360] sm:$0xff]
    %v1833 = vld [vmem:[#allocation8 + $0x368] sm:$0xff]
    %v1834 = vld [vmem:[#allocation8 + $0x370] sm:$0xff]
    %v1835 = vld [vmem:[#allocation8 + $0x378] sm:$0xff]
    %v1836 = vld [vmem:[#allocation8 + $0x380] sm:$0xff]
    %v1837 = vld [vmem:[#allocation8 + $0x388] sm:$0xff]
    %v1838 = vld [vmem:[#allocation8 + $0x390] sm:$0xff]
    %v1839 = vld [vmem:[#allocation8 + $0x398] sm:$0xff]
    %v1840 = vld [vmem:[#allocation8 + $0x3a0] sm:$0xff]
    %v1841 = vld [vmem:[#allocation8 + $0x3a8] sm:$0xff]
    %v1842 = vld [vmem:[#allocation8 + $0x3b0] sm:$0xff]
    %v1843 = vld [vmem:[#allocation8 + $0x3b8] sm:$0xff]
    %v1844 = vld [vmem:[#allocation8 + $0x3c0] sm:$0xff]
    %v1845 = vld [vmem:[#allocation8 + $0x3c8] sm:$0xff]
    %v1846 = vld [vmem:[#allocation8 + $0x3d0] sm:$0xff]
    %v1847 = vld [vmem:[#allocation8 + $0x3d8] sm:$0xff]
    %v1848 = vld [vmem:[#allocation8 + $0x3e0] sm:$0xff]
    %v1849 = vld [vmem:[#allocation8 + $0x3e8] sm:$0xff]
    %v1850 = vld [vmem:[#allocation8 + $0x3f0] sm:$0xff]
    %v1851 = vld [vmem:[#allocation8 + $0x3f8] sm:$0xff]
    %v1852 = vld [vmem:[#allocation8 + $0x400] sm:$0xff]
    %v1853 = vld [vmem:[#allocation8 + $0x408] sm:$0xff]
    %v1854 = vld [vmem:[#allocation8 + $0x410] sm:$0xff]
    %v1855 = vld [vmem:[#allocation8 + $0x418] sm:$0xff]
    %v1856 = vld [vmem:[#allocation8 + $0x420] sm:$0xff]
    %v1857 = vld [vmem:[#allocation8 + $0x428] sm:$0xff]
    %v1858 = vld [vmem:[#allocation8 + $0x430] sm:$0xff]
    %v1859 = vld [vmem:[#allocation8 + $0x438] sm:$0xff]
    %v1860 = vld [vmem:[#allocation8 + $0x440] sm:$0xff]
    %v1861 = vld [vmem:[#allocation8 + $0x448] sm:$0xff]
    %v1862 = vld [vmem:[#allocation8 + $0x450] sm:$0xff]
    %v1863 = vld [vmem:[#allocation8 + $0x458] sm:$0xff]
    %v1864 = vld [vmem:[#allocation8 + $0x460] sm:$0xff]
    %v1865 = vld [vmem:[#allocation8 + $0x468] sm:$0xff]
    %v1866 = vld [vmem:[#allocation8 + $0x470] sm:$0xff]
    %v1867 = vld [vmem:[#allocation8 + $0x478] sm:$0xff]
    %v1868 = vld [vmem:[#allocation8 + $0x480] sm:$0xff]
    %v1869 = vld [vmem:[#allocation8 + $0x488] sm:$0xff]
    %v1870 = vld [vmem:[#allocation8 + $0x490] sm:$0xff]
    %v1871 = vld [vmem:[#allocation8 + $0x498] sm:$0xff]
    %v1872 = vld [vmem:[#allocation8 + $0x4a0] sm:$0xff]
    %v1873 = vld [vmem:[#allocation8 + $0x4a8] sm:$0xff]
    %v1874 = vld [vmem:[#allocation8 + $0x4b0] sm:$0xff]
    %v1875 = vld [vmem:[#allocation8 + $0x4b8] sm:$0xff]
    %v1876 = vld [vmem:[#allocation8 + $0x4c0] sm:$0xff]
    %v1877 = vld [vmem:[#allocation8 + $0x4c8] sm:$0xff]
    %v1878 = vld [vmem:[#allocation8 + $0x4d0] sm:$0xff]
    %v1879 = vld [vmem:[#allocation8 + $0x4d8] sm:$0xff]
    %v1880 = vld [vmem:[#allocation8 + $0x4e0] sm:$0xff]
    %v1881 = vld [vmem:[#allocation8 + $0x4e8] sm:$0xff]
    %v1882 = vld [vmem:[#allocation8 + $0x4f0] sm:$0xff]
    %v1883 = vld [vmem:[#allocation8 + $0x4f8] sm:$0xff]
    %v1884 = vld [vmem:[#allocation8 + $0x500] sm:$0xff]
    %v1885 = vld [vmem:[#allocation8 + $0x508] sm:$0xff]
    %v1886 = vld [vmem:[#allocation8 + $0x510] sm:$0xff]
    %v1887 = vld [vmem:[#allocation8 + $0x518] sm:$0xff]
    %v1888 = vld [vmem:[#allocation8 + $0x520] sm:$0xff]
    %v1889 = vld [vmem:[#allocation8 + $0x528] sm:$0xff]
    %v1890 = vld [vmem:[#allocation8 + $0x530] sm:$0xff]
    %v1891 = vld [vmem:[#allocation8 + $0x538] sm:$0xff]
    %v1892 = vld [vmem:[#allocation8 + $0x540] sm:$0xff]
    %v1893 = vld [vmem:[#allocation8 + $0x548] sm:$0xff]
    %v1894 = vld [vmem:[#allocation8 + $0x550] sm:$0xff]
    %v1895 = vld [vmem:[#allocation8 + $0x558] sm:$0xff]
    %v1896 = vld [vmem:[#allocation8 + $0x560] sm:$0xff]
    %v1897 = vld [vmem:[#allocation8 + $0x568] sm:$0xff]
    %v1898 = vld [vmem:[#allocation8 + $0x570] sm:$0xff]
    %v1899 = vld [vmem:[#allocation8 + $0x578] sm:$0xff]
    %v1900 = vld [vmem:[#allocation8 + $0x580] sm:$0xff]
    %v1901 = vld [vmem:[#allocation8 + $0x588] sm:$0xff]
    %v1902 = vld [vmem:[#allocation8 + $0x590] sm:$0xff]
    %v1903 = vld [vmem:[#allocation8 + $0x598] sm:$0xff]
    %v1904 = vld [vmem:[#allocation8 + $0x5a0] sm:$0xff]
    %v1905 = vld [vmem:[#allocation8 + $0x5a8] sm:$0xff]
    %v1906 = vld [vmem:[#allocation8 + $0x5b0] sm:$0xff]
    %v1907 = vld [vmem:[#allocation8 + $0x5b8] sm:$0xff]
    %v1908 = vld [vmem:[#allocation8 + $0x5c0] sm:$0xff]
    %v1909 = vld [vmem:[#allocation8 + $0x5c8] sm:$0xff]
    %v1910 = vld [vmem:[#allocation8 + $0x5d0] sm:$0xff]
    %v1911 = vld [vmem:[#allocation8 + $0x5d8] sm:$0xff]
    %v1912 = vld [vmem:[#allocation8 + $0x5e0] sm:$0xff]
    %v1913 = vld [vmem:[#allocation8 + $0x5e8] sm:$0xff]
    %v1914 = vld [vmem:[#allocation8 + $0x5f0] sm:$0xff]
    %v1915 = vld [vmem:[#allocation8 + $0x5f8] sm:$0xff]
    %s1916 = scalar_lea.vmem %s4, 2
    %v1917 = vld [vmem:[%s1916] ss:$4 sm:$0x3]
    %v1918 = vld [vmem:[#allocation2] sm:$0xff]
    %v1919 = vld [vmem:[#allocation2 + $0x8] sm:$0xff]
    %v1920 = vld [vmem:[#allocation2 + $0x10] sm:$0xff]
    %v1921 = vld [vmem:[#allocation2 + $0x18] sm:$0xff]
    %v1922 = vld [vmem:[#allocation2 + $0x30] sm:$0xff]
    %v1923 = vld [vmem:[#allocation2 + $0x38] sm:$0xff]
    %v1924 = vld [vmem:[#allocation2 + $0x40] sm:$0xff]
    %v1925 = vld [vmem:[#allocation2 + $0x48] sm:$0xff]
    %v1926 = vld [vmem:[#allocation2] sm:$0xfe]
    %v1927 = vld [vmem:[#allocation2 + $0x8] sm:$0xfe]
    %v1928 = vld [vmem:[#allocation2 + $0x20] sm:$0x1]
    %v1929 = vld [vmem:[#allocation2 + $0x28] sm:$0x1]
    %v1930 = vld [vmem:[#allocation2 + $0x30] sm:$0xfe]
    %v1931 = vld [vmem:[#allocation2 + $0x38] sm:$0xfe]
    %v1932 = vld [vmem:[#allocation2 + $0x50] sm:$0x1]
    %v1933 = vld [vmem:[#allocation2 + $0x58] sm:$0x1]
    %v1946 = vrot.slane %v1926, 1
    %v1947 = vrot.slane %v1920, 1
    %v1948 = vsel %vm179, %v1946, %v1947
    %v1949 = vrot.slane %v1927, 1
    %v1950 = vrot.slane %v1921, 1
    %v1951 = vsel %vm179, %v1949, %v1950
    %v1952 = vrot.slane %v1928, 1
    %v1953 = vsel %vm179, %v1947, %v1952
    %v1954 = vrot.slane %v1929, 1
    %v1955 = vsel %vm179, %v1950, %v1954
    %v1956 = vrot.slane %v1930, 1
    %v1957 = vrot.slane %v1924, 1
    %v1958 = vsel %vm179, %v1956, %v1957
    %v1959 = vrot.slane %v1931, 1
    %v1960 = vrot.slane %v1925, 1
    %v1961 = vsel %vm179, %v1959, %v1960
    %v1962 = vrot.slane %v1932, 1
    %v1963 = vsel %vm179, %v1957, %v1962
    %v1964 = vrot.slane %v1933, 1
    %v1965 = vsel %vm179, %v1960, %v1964
    %1974 = vmatprep.subr.mxu0 %v1789
    %1975 = vmatpush1.msra.mxu0 %v1788
    %1976 = vmatprep.subr.mxu0 %v1791
    %1977 = vmatpush1.msra.mxu0 %v1790
    %1978 = vmatprep.subr.mxu0 %v1793
    %1979 = vmatpush1.msra.mxu0 %v1792
    %1980 = vmatprep.subr.mxu0 %v1795
    %1981 = vmatpush1.msra.mxu0 %v1794
    %1982 = vmatprep.subr.mxu0 %v1797
    %1983 = vmatpush1.msra.mxu0 %v1796
    %1984 = vmatprep.subr.mxu0 %v1799
    %1985 = vmatpush1.msra.mxu0 %v1798
    %1986 = vmatprep.subr.mxu0 %v1801
    %1987 = vmatpush1.msra.mxu0 %v1800
    %1988 = vmatprep.subr.mxu0 %v1803
    %1989 = vmatpush1.msra.mxu0 %v1802
    %1990 = vmatprep.subr.mxu0 %v1805
    %1991 = vmatpush1.msra.mxu0 %v1804
    %1992 = vmatprep.subr.mxu0 %v1807
    %1993 = vmatpush1.msra.mxu0 %v1806
    %1994 = vmatprep.subr.mxu0 %v1809
    %1995 = vmatpush1.msra.mxu0 %v1808
    %1996 = vmatprep.subr.mxu0 %v1811
    %1997 = vmatpush1.msra.mxu0 %v1810
    %1998 = vmatprep.subr.mxu0 %v1813
    %1999 = vmatpush1.msra.mxu0 %v1812
    %2000 = vmatprep.subr.mxu0 %v1815
    %2001 = vmatpush1.msra.mxu0 %v1814
    %2002 = vmatprep.subr.mxu0 %v1817
    %2003 = vmatpush1.msra.mxu0 %v1816
    %2004 = vmatprep.subr.mxu0 %v1819
    %2005 = vmatpush1.msra.mxu0 %v1818
    %2006 = vmatprep.subr.mxu0 %v1821
    %2007 = vmatpush1.msra.mxu0 %v1820
    %2008 = vmatprep.subr.mxu0 %v1823
    %2009 = vmatpush1.msra.mxu0 %v1822
    %2010 = vmatprep.subr.mxu0 %v1825
    %2011 = vmatpush1.msra.mxu0 %v1824
    %2012 = vmatprep.subr.mxu0 %v1827
    %2013 = vmatpush1.msra.mxu0 %v1826
    %2014 = vmatprep.subr.mxu0 %v1829
    %2015 = vmatpush1.msra.mxu0 %v1828
    %2016 = vmatprep.subr.mxu0 %v1831
    %2017 = vmatpush1.msra.mxu0 %v1830
    %2018 = vmatprep.subr.mxu0 %v1833
    %2019 = vmatpush1.msra.mxu0 %v1832
    %2020 = vmatprep.subr.mxu0 %v1835
    %2021 = vmatpush1.msra.mxu0 %v1834
    %2022 = vmatprep.subr.mxu0 %v1837
    %2023 = vmatpush1.msra.mxu0 %v1836
    %2024 = vmatprep.subr.mxu0 %v1839
    %2025 = vmatpush1.msra.mxu0 %v1838
    %2026 = vmatprep.subr.mxu0 %v1841
    %2027 = vmatpush1.msra.mxu0 %v1840
    %2028 = vmatprep.subr.mxu0 %v1843
    %2029 = vmatpush1.msra.mxu0 %v1842
    %2030 = vmatprep.subr.mxu0 %v1845
    %2031 = vmatpush1.msra.mxu0 %v1844
    %2032 = vmatprep.subr.mxu0 %v1847
    %2033 = vmatpush1.msra.mxu0 %v1846
    %2034 = vmatprep.subr.mxu0 %v1849
    %2035 = vmatpush1.msra.mxu0 %v1848
    %2036 = vmatprep.subr.mxu0 %v1851
    %2037 = vmatpush1.msra.mxu0 %v1850
    %2038 = vmatprep.mubr.f32.mxu0 %v1951
    %2039 = vmatmul.mubr.f32.gmra.mrb[0].mxu0 %v1948
    %v2040 = vpop.f32.mrb[0].mxu0
    %v2041 = vadd.f32 0.0, %v2040
    %v2042 = vpop.f32.mrb[0].mxu0
    %v2043 = vadd.f32 0.0, %v2042
    %2044 = vmatprep.mubr.f32.mxu0 %v1955
    %2045 = vmatmul.mubr.f32.gmra.mrb[0].mxu0 %v1953
    %v2046 = vpop.f32.mrb[0].mxu0
    %v2047 = vadd.f32 0.0, %v2046
    %v2048 = vpop.f32.mrb[0].mxu0
    %v2049 = vadd.f32 0.0, %v2048
    %2050 = vmatprep.mubr.f32.mxu0 %v1961
    %2051 = vmatmul.mubr.f32.gmra.mrb[0].mxu0 %v1958
    %v2052 = vpop.f32.mrb[0].mxu0
    %v2053 = vadd.f32 0.0, %v2052
    %v2054 = vpop.f32.mrb[0].mxu0
    %v2055 = vadd.f32 0.0, %v2054
    %2056 = vmatprep.mubr.f32.mxu0 %v1965
    %2057 = vmatmul.mubr.f32.gmra.mrb[0].mxu0 %v1963
    %v2058 = vpop.f32.mrb[0].mxu0
    %v2059 = vadd.f32 0.0, %v2058
    %v2060 = vpop.f32.mrb[0].mxu0
    %v2061 = vadd.f32 0.0, %v2060
    %2062 = vdwg.mxu0
    %2063 = vmatprep.subr.mxu0 %v1725
    %2064 = vmatpush1.msra.mxu0 %v1724
    %2065 = vmatprep.subr.mxu0 %v1727
    %2066 = vmatpush1.msra.mxu0 %v1726
    %2067 = vmatprep.subr.mxu0 %v1729
    %2068 = vmatpush1.msra.mxu0 %v1728
    %2069 = vmatprep.subr.mxu0 %v1731
    %2070 = vmatpush1.msra.mxu0 %v1730
    %2071 = vmatprep.subr.mxu0 %v1733
    %2072 = vmatpush1.msra.mxu0 %v1732
    %2073 = vmatprep.subr.mxu0 %v1735
    %2074 = vmatpush1.msra.mxu0 %v1734
    %2075 = vmatprep.subr.mxu0 %v1737
    %2076 = vmatpush1.msra.mxu0 %v1736
    %2077 = vmatprep.subr.mxu0 %v1739
    %2078 = vmatpush1.msra.mxu0 %v1738
    %2079 = vmatprep.subr.mxu0 %v1741
    %2080 = vmatpush1.msra.mxu0 %v1740
    %2081 = vmatprep.subr.mxu0 %v1743
    %2082 = vmatpush1.msra.mxu0 %v1742
    %2083 = vmatprep.subr.mxu0 %v1745
    %2084 = vmatpush1.msra.mxu0 %v1744
    %2085 = vmatprep.subr.mxu0 %v1747
    %2086 = vmatpush1.msra.mxu0 %v1746
    %2087 = vmatprep.subr.mxu0 %v1749
    %2088 = vmatpush1.msra.mxu0 %v1748
    %2089 = vmatprep.subr.mxu0 %v1751
    %2090 = vmatpush1.msra.mxu0 %v1750
    %2091 = vmatprep.subr.mxu0 %v1753
    %2092 = vmatpush1.msra.mxu0 %v1752
    %2093 = vmatprep.subr.mxu0 %v1755
    %2094 = vmatpush1.msra.mxu0 %v1754
    %2095 = vmatprep.subr.mxu0 %v1757
    %2096 = vmatpush1.msra.mxu0 %v1756
    %2097 = vmatprep.subr.mxu0 %v1759
    %2098 = vmatpush1.msra.mxu0 %v1758
    %2099 = vmatprep.subr.mxu0 %v1761
    %2100 = vmatpush1.msra.mxu0 %v1760
    %2101 = vmatprep.subr.mxu0 %v1763
    %2102 = vmatpush1.msra.mxu0 %v1762
    %2103 = vmatprep.subr.mxu0 %v1765
    %2104 = vmatpush1.msra.mxu0 %v1764
    %2105 = vmatprep.subr.mxu0 %v1767
    %2106 = vmatpush1.msra.mxu0 %v1766
    %2107 = vmatprep.subr.mxu0 %v1769
    %2108 = vmatpush1.msra.mxu0 %v1768
    %2109 = vmatprep.subr.mxu0 %v1771
    %2110 = vmatpush1.msra.mxu0 %v1770
    %2111 = vmatprep.subr.mxu0 %v1773
    %2112 = vmatpush1.msra.mxu0 %v1772
    %2113 = vmatprep.subr.mxu0 %v1775
    %2114 = vmatpush1.msra.mxu0 %v1774
    %2115 = vmatprep.subr.mxu0 %v1777
    %2116 = vmatpush1.msra.mxu0 %v1776
    %2117 = vmatprep.subr.mxu0 %v1779
    %2118 = vmatpush1.msra.mxu0 %v1778
    %2119 = vmatprep.subr.mxu0 %v1781
    %2120 = vmatpush1.msra.mxu0 %v1780
    %2121 = vmatprep.subr.mxu0 %v1783
    %2122 = vmatpush1.msra.mxu0 %v1782
    %2123 = vmatprep.subr.mxu0 %v1785
    %2124 = vmatpush1.msra.mxu0 %v1784
    %2125 = vmatprep.subr.mxu0 %v1787
    %2126 = vmatpush1.msra.mxu0 %v1786
    %2127 = vmatprep.mubr.f32.mxu0 %v1919
    %2128 = vmatmul.mubr.f32.gmra.mrb[0].mxu0 %v1918
    %v2129 = vpop.f32.mrb[0].mxu0
    %v2130 = vadd.f32 %v2041, %v2129
    %v2131 = vpop.f32.mrb[0].mxu0
    %v2132 = vadd.f32 %v2043, %v2131
    %2133 = vmatprep.mubr.f32.mxu0 %v1921
    %2134 = vmatmul.mubr.f32.gmra.mrb[0].mxu0 %v1920
    %v2135 = vpop.f32.mrb[0].mxu0
    %v2136 = vadd.f32 %v2047, %v2135
    %v2137 = vpop.f32.mrb[0].mxu0
    %v2138 = vadd.f32 %v2049, %v2137
    %2139 = vmatprep.mubr.f32.mxu0 %v1923
    %2140 = vmatmul.mubr.f32.gmra.mrb[0].mxu0 %v1922
    %v2141 = vpop.f32.mrb[0].mxu0
    %v2142 = vadd.f32 %v2053, %v2141
    %v2143 = vpop.f32.mrb[0].mxu0
    %v2144 = vadd.f32 %v2055, %v2143
    %2145 = vmatprep.mubr.f32.mxu0 %v1925
    %2146 = vmatmul.mubr.f32.gmra.mrb[0].mxu0 %v1924
    %v2147 = vpop.f32.mrb[0].mxu0
    %v2148 = vadd.f32 %v2059, %v2147
    %v2149 = vpop.f32.mrb[0].mxu0
    %v2150 = vadd.f32 %v2061, %v2149
    %2151 = vdwg.mxu0
    %v2152 = vld [vmem:[#allocation2] sm:$0xfc]
    %v2153 = vld [vmem:[#allocation2 + $0x8] sm:$0xfc]
    %v2154 = vld [vmem:[#allocation2 + $0x20] sm:$0x3]
    %v2155 = vld [vmem:[#allocation2 + $0x28] sm:$0x3]
    %v2156 = vld [vmem:[#allocation2 + $0x30] sm:$0xfc]
    %v2157 = vld [vmem:[#allocation2 + $0x38] sm:$0xfc]
    %v2158 = vld [vmem:[#allocation2 + $0x50] sm:$0x3]
    %v2159 = vld [vmem:[#allocation2 + $0x58] sm:$0x3]
    %v2168 = vrot.slane %v2152, 2
    %v2169 = vrot.slane %v1920, 2
    %v2170 = vsel %vm394, %v2168, %v2169
    %v2171 = vrot.slane %v2153, 2
    %v2172 = vrot.slane %v1921, 2
    %v2173 = vsel %vm394, %v2171, %v2172
    %v2174 = vrot.slane %v2154, 2
    %v2175 = vsel %vm394, %v2169, %v2174
    %v2176 = vrot.slane %v2155, 2
    %v2177 = vsel %vm394, %v2172, %v2176
    %v2178 = vrot.slane %v2156, 2
    %v2179 = vrot.slane %v1924, 2
    %v2180 = vsel %vm394, %v2178, %v2179
    %v2181 = vrot.slane %v2157, 2
    %v2182 = vrot.slane %v1925, 2
    %v2183 = vsel %vm394, %v2181, %v2182
    %v2184 = vrot.slane %v2158, 2
    %v2185 = vsel %vm394, %v2179, %v2184
    %v2186 = vrot.slane %v2159, 2
    %v2187 = vsel %vm394, %v2182, %v2186
    %2196 = vmatprep.subr.mxu0 %v1853
    %2197 = vmatpush1.msra.mxu0 %v1852
    %2198 = vmatprep.subr.mxu0 %v1855
    %2199 = vmatpush1.msra.mxu0 %v1854
    %2200 = vmatprep.subr.mxu0 %v1857
    %2201 = vmatpush1.msra.mxu0 %v1856
    %2202 = vmatprep.subr.mxu0 %v1859
    %2203 = vmatpush1.msra.mxu0 %v1858
    %2204 = vmatprep.subr.mxu0 %v1861
    %2205 = vmatpush1.msra.mxu0 %v1860
    %2206 = vmatprep.subr.mxu0 %v1863
    %2207 = vmatpush1.msra.mxu0 %v1862
    %2208 = vmatprep.subr.mxu0 %v1865
    %2209 = vmatpush1.msra.mxu0 %v1864
    %2210 = vmatprep.subr.mxu0 %v1867
    %2211 = vmatpush1.msra.mxu0 %v1866
    %2212 = vmatprep.subr.mxu0 %v1869
    %2213 = vmatpush1.msra.mxu0 %v1868
    %2214 = vmatprep.subr.mxu0 %v1871
    %2215 = vmatpush1.msra.mxu0 %v1870
    %2216 = vmatprep.subr.mxu0 %v1873
    %2217 = vmatpush1.msra.mxu0 %v1872
    %2218 = vmatprep.subr.mxu0 %v1875
    %2219 = vmatpush1.msra.mxu0 %v1874
    %2220 = vmatprep.subr.mxu0 %v1877
    %2221 = vmatpush1.msra.mxu0 %v1876
    %2222 = vmatprep.subr.mxu0 %v1879
    %2223 = vmatpush1.msra.mxu0 %v1878
    %2224 = vmatprep.subr.mxu0 %v1881
    %2225 = vmatpush1.msra.mxu0 %v1880
    %2226 = vmatprep.subr.mxu0 %v1883
    %2227 = vmatpush1.msra.mxu0 %v1882
    %2228 = vmatprep.subr.mxu0 %v1885
    %2229 = vmatpush1.msra.mxu0 %v1884
    %2230 = vmatprep.subr.mxu0 %v1887
    %2231 = vmatpush1.msra.mxu0 %v1886
    %2232 = vmatprep.subr.mxu0 %v1889
    %2233 = vmatpush1.msra.mxu0 %v1888
    %2234 = vmatprep.subr.mxu0 %v1891
    %2235 = vmatpush1.msra.mxu0 %v1890
    %2236 = vmatprep.subr.mxu0 %v1893
    %2237 = vmatpush1.msra.mxu0 %v1892
    %2238 = vmatprep.subr.mxu0 %v1895
    %2239 = vmatpush1.msra.mxu0 %v1894
    %2240 = vmatprep.subr.mxu0 %v1897
    %2241 = vmatpush1.msra.mxu0 %v1896
    %2242 = vmatprep.subr.mxu0 %v1899
    %2243 = vmatpush1.msra.mxu0 %v1898
    %2244 = vmatprep.subr.mxu0 %v1901
    %2245 = vmatpush1.msra.mxu0 %v1900
    %2246 = vmatprep.subr.mxu0 %v1903
    %2247 = vmatpush1.msra.mxu0 %v1902
    %2248 = vmatprep.subr.mxu0 %v1905
    %2249 = vmatpush1.msra.mxu0 %v1904
    %2250 = vmatprep.subr.mxu0 %v1907
    %2251 = vmatpush1.msra.mxu0 %v1906
    %2252 = vmatprep.subr.mxu0 %v1909
    %2253 = vmatpush1.msra.mxu0 %v1908
    %2254 = vmatprep.subr.mxu0 %v1911
    %2255 = vmatpush1.msra.mxu0 %v1910
    %2256 = vmatprep.subr.mxu0 %v1913
    %2257 = vmatpush1.msra.mxu0 %v1912
    %2258 = vmatprep.subr.mxu0 %v1915
    %2259 = vmatpush1.msra.mxu0 %v1914
    %2260 = vmatprep.mubr.f32.mxu0 %v2173
    %2261 = vmatmul.mubr.f32.gmra.mrb[0].mxu0 %v2170
    %v2262 = vpop.f32.mrb[0].mxu0
    %v2263 = vadd.f32 0.0, %v2262
    %v2264 = vpop.f32.mrb[0].mxu0
    %v2265 = vadd.f32 0.0, %v2264
    %2266 = vmatprep.mubr.f32.mxu0 %v2177
    %2267 = vmatmul.mubr.f32.gmra.mrb[0].mxu0 %v2175
    %v2268 = vpop.f32.mrb[0].mxu0
    %v2269 = vadd.f32 0.0, %v2268
    %v2270 = vpop.f32.mrb[0].mxu0
    %v2271 = vadd.f32 0.0, %v2270
    %2272 = vmatprep.mubr.f32.mxu0 %v2183
    %2273 = vmatmul.mubr.f32.gmra.mrb[0].mxu0 %v2180
    %v2274 = vpop.f32.mrb[0].mxu0
    %v2275 = vadd.f32 0.0, %v2274
    %v2276 = vpop.f32.mrb[0].mxu0
    %v2277 = vadd.f32 0.0, %v2276
    %2278 = vmatprep.mubr.f32.mxu0 %v2187
    %2279 = vmatmul.mubr.f32.gmra.mrb[0].mxu0 %v2185
    %v2280 = vpop.f32.mrb[0].mxu0
    %v2281 = vadd.f32 0.0, %v2280
    %v2282 = vpop.f32.mrb[0].mxu0
    %v2283 = vadd.f32 0.0, %v2282
    %2284 = vdwg.mxu0
    %v2285 = vadd.f32 %v2130, %v2263
    %v2286 = vadd.f32 %v2132, %v2265
    %v2287 = vadd.f32 %v2136, %v2269
    %v2288 = vadd.f32 %v2138, %v2271
    %v2289 = vadd.f32 %v2142, %v2275
    %v2290 = vadd.f32 %v2144, %v2277
    %v2291 = vadd.f32 %v2148, %v2281
    %v2292 = vadd.f32 %v2150, %v2283
    %v2294 = vlaneseq
    %v2295 = vshrl.u32 %v2294, 7
    %v2296 = vsub.s32 0, %v2295
    %v2297 = vrot.slane %v1917, %v2296
    %v2298 = vlaneseq
    %v2299 = vshrl.u32 %v2298, 7
    %v2300 = vsub.s32 1, %v2299
    %v2301 = vrot.slane %v1917, %v2300
    %v2304 = vadd.f32 %v2285, %v2297
    %v2305 = vadd.f32 %v2286, %v2301
    %v2306 = vadd.f32 %v2287, %v2297
    %v2307 = vadd.f32 %v2288, %v2301
    %v2308 = vadd.f32 %v2289, %v2297
    %v2309 = vadd.f32 %v2290, %v2301
    %v2310 = vadd.f32 %v2291, %v2297
    %v2311 = vadd.f32 %v2292, %v2301
    %vm2312 = vcmp.gt.f32.partialorder %v2304, 0.0
    %vm2313 = vcmp.gt.f32.partialorder %v2305, 0.0
    %vm2314 = vcmp.gt.f32.partialorder %v2306, 0.0
    %vm2315 = vcmp.gt.f32.partialorder %v2307, 0.0
    %vm2316 = vcmp.gt.f32.partialorder %v2308, 0.0
    %vm2317 = vcmp.gt.f32.partialorder %v2309, 0.0
    %vm2318 = vcmp.gt.f32.partialorder %v2310, 0.0
    %vm2319 = vcmp.gt.f32.partialorder %v2311, 0.0
    %v2320 = vmul.f32 %v2304, 0.01
    %v2321 = vmul.f32 %v2305, 0.01
    %v2322 = vmul.f32 %v2306, 0.01
    %v2323 = vmul.f32 %v2307, 0.01
    %v2324 = vmul.f32 %v2308, 0.01
    %v2325 = vmul.f32 %v2309, 0.01
    %v2326 = vmul.f32 %v2310, 0.01
    %v2327 = vmul.f32 %v2311, 0.01
    %v2328 = vsel %vm2312, %v2304, %v2320
    %v2329 = vsel %vm2313, %v2305, %v2321
    %v2330 = vsel %vm2314, %v2306, %v2322
    %v2331 = vsel %vm2315, %v2307, %v2323
    %v2332 = vsel %vm2316, %v2308, %v2324
    %v2333 = vsel %vm2317, %v2309, %v2325
    %v2334 = vsel %vm2318, %v2310, %v2326
    %v2335 = vsel %vm2319, %v2311, %v2327
    %2336 = vst [vmem:[#allocation9] sm:$0xff] %v2328
    %2337 = vst [vmem:[#allocation9 + $0x8] sm:$0xff] %v2329
    %2338 = vst [vmem:[#allocation9 + $0x10] sm:$0xff] %v2330
    %2339 = vst [vmem:[#allocation9 + $0x18] sm:$0xff] %v2331
    %2340 = vst [vmem:[#allocation9 + $0x20] sm:$0xff] %v2332
    %2341 = vst [vmem:[#allocation9 + $0x28] sm:$0xff] %v2333
    %2342 = vst [vmem:[#allocation9 + $0x30] sm:$0xff] %v2334
    %2343 = vst [vmem:[#allocation9 + $0x38] sm:$0xff] %v2335
    // Predicated region
    $region46: #{tpu_custom_call.1} parent=1 // pred_check
      _
    $region47: #{tpu_custom_call.1} parent=1 // pred_check_branch
      %2345 = sbr.rel (0) target = $region49
    $region48: #{tpu_custom_call.1} parent=1 // pred_region
      %s2347 = ssub.s32 1024, 1024
      %2348 = vsyncadd [#allocation5], %s2347
      %s2349 = sshll.u32 [#allocation9], 4
      %s2350 = int_to_ptr.vmem [resolvable:$true] %s2349
      %2355 = dma.vmem_to_hbm [thread:$0]  %s2350, 1024, %s8, [#allocation5], 256, 256, 16
    $region49: #{tpu_custom_call.1} parent=1 // pred_fallthru
      _
    // Predicated region
    $region50: #{tpu_custom_call.1} parent=1 // pred_check
      _
    $region51: #{tpu_custom_call.1} parent=1 // pred_check_branch
      %2357 = sbr.rel (0) target = $region53
    $region52: #{tpu_custom_call.1} parent=1 // pred_region
      %2358 = dma.done [#allocation5], 1024
    $region53: #{tpu_custom_call.1} parent=1 // pred_fallthru
      _
    %2359 = vsyncpa [#allocation4], 1
    %2360 = vsyncpa [#allocation7], 1
    %2361 = vsyncpa [#allocation5], 1

</llo_original>
